<compile_context>
chip_gen: v7x
topology: tpu7x:2x2x1
jax: 0.10.0
libtpu: 0.0.40
codegen_flags: <defaults>
</compile_context>

<pallas_src>
import functools
import math

import jax
import jax.numpy as jnp
from jax import lax
from jax.experimental import pallas as pl
from jax.experimental.pallas import tpu as pltpu


# ---------------------------------------------------------------------------
# Reference sinusoidal table (mirrors the PyTorch __init__; used for the ref
# implementation and the small-input fast path).
# ---------------------------------------------------------------------------
def _pe_table(seq_len: int, d_model: int) -> jnp.ndarray:
    """First `seq_len` rows of the PyTorch pe buffer, shape (seq_len, d_model)."""
    assert d_model % 2 == 0, "sinusoidal PositionalEncoding requires even d_model"
    position = jnp.arange(seq_len, dtype=jnp.float32)[:, None]               # (S, 1)
    div_term = jnp.exp(
        jnp.arange(0, d_model, 2, dtype=jnp.float32) * (-math.log(10000.0) / d_model)
    )                                                                        # (D/2,)
    pe = jnp.zeros((seq_len, d_model), dtype=jnp.float32)
    pe = pe.at[:, 0::2].set(jnp.sin(position * div_term))
    pe = pe.at[:, 1::2].set(jnp.cos(position * div_term))
    return pe


def positional_encoding_ref(x: jnp.ndarray) -> jnp.ndarray:
    """Pure-JAX reference (mirrors the PyTorch forward)."""
    S, _, D = x.shape
    return x + _pe_table(S, D)[:, None, :].astype(x.dtype)


# ---------------------------------------------------------------------------
# Per-lane constant tables (computed once in the wrapper, resident in VMEM).
# Lane c of the folded (S/fold, fold*B*D) view maps to sequence offset
# c // (B*D) and feature index (c % (B*D)) % D; pe depends only on those.
# ---------------------------------------------------------------------------
def _lane_tables(batch: int, d_model: int, fold: int):
    bd = batch * d_model
    L = fold * bd
    c = jnp.arange(L, dtype=jnp.int32)
    d = (c % bd) % d_model                                    # feature index
    seq_off = (c // bd).astype(jnp.float32)                   # within-fold position offset
    parity = d & 1                                            # 0 -> sin, 1 -> cos
    two_k = (d - parity).astype(jnp.float32)                  # the "2k" exponent
    inv_freq = jnp.exp(two_k * (-math.log(10000.0) / d_model))
    # Fold both the even/odd phase and the within-fold position into one offset:
    #   angle = (base_pos * inv_freq) + phase, with base_pos = folded_row * fold.
    phase = seq_off * inv_freq + parity.astype(jnp.float32) * (0.5 * math.pi)
    return inv_freq.reshape(1, L), phase.reshape(1, L)


# ---------------------------------------------------------------------------
# Pallas kernel: lane-dense broadcast add, single phased sin per element.
# ---------------------------------------------------------------------------
def _pos_enc_kernel(x_ref, freq_ref, phase_ref, o_ref, *, seq_tile: int, fold: int):
    # x_ref / o_ref: (ts, L) lane-dense tiles.  freq_ref / phase_ref: (1, L) constants.
    i = pl.program_id(0)
    ts = x_ref.shape[0]
    row = lax.broadcasted_iota(jnp.int32, (ts, 1), 0)             # local folded-row offset
    base_pos = ((i * seq_tile + row) * fold).astype(jnp.float32)  # (ts, 1) global position base
    angle = base_pos * freq_ref[...] + phase_ref[...]             # (ts, L) via broadcast
    o_ref[...] = x_ref[...] + jnp.sin(angle).astype(o_ref.dtype)  # 1 EUP op per element


def positional_encoding(
    x: jnp.ndarray,
    *,
    max_len: int = 5000,
    seq_tile: int | None = None,
    target_tile_bytes: int = 2 * 1024 * 1024,
    donate_input: bool = False,        # only set True if the caller really donates x
    force_kernel: bool = False,
    min_kernel_bytes: int = 1 << 20,
    vmem_limit_bytes: int | None = None,
) -> jnp.ndarray:
    """x: (S, B, D) float.  Returns x + pe[:S] (pe broadcast over batch)."""
    S, B, D = x.shape
    assert D % 2 == 0, "sinusoidal PositionalEncoding requires even d_model"
    assert S <= max_len, "sequence length exceeds max_len of the pe buffer"

    itemsize = jnp.dtype(x.dtype).itemsize
    total_bytes = S * B * D * itemsize

    # Fast path: pallas_call launch/DMA overhead dwarfs a <1 MiB broadcast add.
    if not force_kernel and total_bytes < min_kernel_bytes:
        return x + _pe_table(S, D)[:, None, :].astype(x.dtype)

    BD = B * D
    # --- lane-density: fold sequence rows into the lane axis until L % 128 == 0 ---
    fold = 1
    if BD % 128 != 0:
        k0 = 128 // math.gcd(BD, 128)
        if k0 > 1 and S % k0 == 0:
            fold = k0
    S_f = S // fold
    L = fold * BD
    x2 = x.reshape(S_f, L)              # pure row-major layout plumbing, free

    # --- tile selection ---
    align = {1: 32, 2: 16}.get(itemsize, 8)   # packed sublane tile per dtype
    row_bytes = L * itemsize
    if seq_tile is not None:
        ts = min(seq_tile, S_f)
    else:
        steps = max(1, -(-total_bytes // target_tile_bytes))
        if total_bytes >= (2 << 20):
            steps = max(steps, 4)             # >=4 steps keeps the DMA pipeline full
        if steps > 1 and steps % 2 == 1:
            steps += 1                        # even grid: balanced over 2 TCs (v7x)
        ts = -(-S_f // steps)
    if ts < S_f:
        ts = max(align, -(-ts // align) * align)
        ts = min(ts, S_f)
    if ts >= S_f:
        ts = S_f                              # full-extent block is always legal

    grid = (pl.cdiv(S_f, ts),)                # partial last block handled by Pallas
    tile_bytes = ts * row_bytes

    if vmem_limit_bytes is None:
        # double-buffered in + out tiles, plus the two small resident lane tables
        vmem_limit_bytes = max(32 * 1024 * 1024, 4 * tile_bytes + 8 * L * 4 + (1 << 20))

    inv_freq, phase = _lane_tables(B, D, fold)
    kernel = functools.partial(_pos_enc_kernel, seq_tile=ts, fold=fold)

    cost = pl.CostEstimate(
        flops=3 * S * B * D,
        transcendentals=S * B * D,
        bytes_accessed=2 * S * B * D * itemsize + 2 * L * 4,
    )

    out2 = pl.pallas_call(
        kernel,
        out_shape=jax.ShapeDtypeStruct((S_f, L), x.dtype),
        grid_spec=pltpu.PrefetchScalarGridSpec(
            num_scalar_prefetch=0,
            grid=grid,
            in_specs=[
                pl.BlockSpec((ts, L), lambda i: (i, 0)),   # x tile
                pl.BlockSpec((1, L), lambda i: (0, 0)),    # inv_freq (resident)
                pl.BlockSpec((1, L), lambda i: (0, 0)),    # phase    (resident)
            ],
            out_specs=pl.BlockSpec((ts, L), lambda i: (i, 0)),
        ),
        input_output_aliases=({0: 0} if donate_input else {}),
        compiler_params=pltpu.CompilerParams(
            dimension_semantics=("parallel",),
            vmem_limit_bytes=int(vmem_limit_bytes),
        ),
        cost_estimate=cost,
    )(x2, inv_freq, phase)

    return out2.reshape(S, B, D)


# ---------------------------------------------------------------------------
# Self-test
# ---------------------------------------------------------------------------
if __name__ == "__main__":
    key = jax.random.PRNGKey(0)
    k0, k1, k2, k3 = jax.random.split(key, 4)

    # Phased-sin vs the XLA-built sin/cos table differs by a few ulps; 1e-3 absolute
    # is far below any real layout/indexing bug.
    TOL = dict(atol=1e-3, rtol=1e-3)

    # 1) Tiny module-sized shape: plain-JAX fast path (bit-identical to the reference).
    S, B, D = 8, 2, 32
    x_small = jax.random.normal(k0, (S, B, D), dtype=jnp.float32)
    out_small = jax.block_until_ready(positional_encoding(x_small))
    ref_small = positional_encoding_ref(x_small)
    assert out_small.shape == (S, B, D) and out_small.dtype == jnp.float32
    assert jnp.allclose(out_small, ref_small, atol=1e-5, rtol=1e-5)

    # 2) Kernel path, lane-dense (B*D = 256 is a multiple of 128), 4-step grid.
    S, B, D = 256, 4, 64
    x = jax.random.normal(k1, (S, B, D), dtype=jnp.float32)
    ref = positional_encoding_ref(x)
    out = jax.block_until_ready(positional_encoding(x, seq_tile=64, force_kernel=True))
    assert out.shape == (S, B, D) and out.dtype == jnp.float32
    assert jnp.allclose(out, ref, **TOL), float(jnp.max(jnp.abs(out - ref)))

    # 3) Kernel path with lane folding: B*D = 64 -> fold=2 -> 128-wide lanes.
    S, B, D = 96, 2, 32
    x = jax.random.normal(k2, (S, B, D), dtype=jnp.float32)
    ref = positional_encoding_ref(x)
    out = jax.block_until_ready(positional_encoding(x, seq_tile=16, force_kernel=True))
    assert out.shape == (S, B, D)
    assert jnp.allclose(out, ref, **TOL), float(jnp.max(jnp.abs(out - ref)))

    # 4) Kernel path where folding is impossible (odd S) + ragged partial last block.
    S, B, D = 33, 2, 32
    x = jax.random.normal(k3, (S, B, D), dtype=jnp.float32)
    ref = positional_encoding_ref(x)
    out = jax.block_until_ready(positional_encoding(x, seq_tile=16, force_kernel=True))
    assert out.shape == (S, B, D)
    assert jnp.allclose(out, ref, **TOL), float(jnp.max(jnp.abs(out - ref)))

    print("KERNEL_OK")
</pallas_src>

<mosaic_0001>
module attributes {stable_mosaic.version = 11 : i64} {
  func.func @_pos_enc_kernel(%arg0: i32, %arg1: memref<64x256xf32, #tpu.memory_space<vmem>>, %arg2: memref<1x256xf32, #tpu.memory_space<vmem>>, %arg3: memref<1x256xf32, #tpu.memory_space<vmem>>, %arg4: memref<64x256xf32, #tpu.memory_space<vmem>>) attributes {dimension_semantics = [#tpu.dimension_semantics<parallel>], iteration_bounds = array<i64: 4>, scalar_prefetch = 0 : i64, scratch_operands = 0 : i64, tpu.core_type = #tpu.core_type<tc>, window_params = [{transform_indices = @transform_0, window_bounds = array<i64: 64, 256>}, {pipeline_mode = #tpu.pipeline_mode<synchronous>, transform_indices = @transform_1, window_bounds = array<i64: 1, 256>}, {pipeline_mode = #tpu.pipeline_mode<synchronous>, transform_indices = @transform_2, window_bounds = array<i64: 1, 256>}, {transform_indices = @transform_3, window_bounds = array<i64: 64, 256>}]} {
    %0 = tpu.iota {dimensions = array<i32: 0>} : vector<64x1xi32>
    %c64_i32 = arith.constant 64 : i32
    %1 = arith.muli %arg0, %c64_i32 : i32
    %2 = vector.broadcast %1 : i32 to vector<64x1xi32>
    %3 = arith.addi %2, %0 : vector<64x1xi32>
    %c1_i32 = arith.constant 1 : i32
    %4 = vector.broadcast %c1_i32 : i32 to vector<64x1xi32>
    %5 = arith.muli %3, %4 : vector<64x1xi32>
    %6 = arith.sitofp %5 : vector<64x1xi32> to vector<64x1xf32>
    %c0 = arith.constant 0 : index
    %c0_0 = arith.constant 0 : index
    %7 = vector.load %arg2[%c0, %c0_0] : memref<1x256xf32, #tpu.memory_space<vmem>>, vector<1x256xf32>
    %8 = vector.broadcast %6 : vector<64x1xf32> to vector<64x256xf32>
    %9 = vector.broadcast %7 : vector<1x256xf32> to vector<64x256xf32>
    %10 = arith.mulf %8, %9 : vector<64x256xf32>
    %c0_1 = arith.constant 0 : index
    %c0_2 = arith.constant 0 : index
    %11 = vector.load %arg3[%c0_1, %c0_2] : memref<1x256xf32, #tpu.memory_space<vmem>>, vector<1x256xf32>
    %12 = vector.broadcast %11 : vector<1x256xf32> to vector<64x256xf32>
    %13 = arith.addf %10, %12 : vector<64x256xf32>
    %c0_3 = arith.constant 0 : index
    %c0_4 = arith.constant 0 : index
    %14 = vector.load %arg1[%c0_3, %c0_4] : memref<64x256xf32, #tpu.memory_space<vmem>>, vector<64x256xf32>
    %15 = math.sin %13 : vector<64x256xf32>
    %16 = arith.addf %14, %15 : vector<64x256xf32>
    %c0_5 = arith.constant 0 : index
    %c0_6 = arith.constant 0 : index
    %17 = vector.load %arg4[%c0_5, %c0_6] : memref<64x256xf32, #tpu.memory_space<vmem>>, vector<64x256xf32>
    tpu.vector_store %arg4[%c0_5, %c0_6], %16 {strides = array<i32>} : memref<64x256xf32, #tpu.memory_space<vmem>>, vector<64x256xf32>,
    return
  }
  func.func @transform_0(%arg0: i32) -> (i32, i32) {
    %c0_i32 = arith.constant 0 : i32
    %c0_i32_0 = arith.constant 0 : i32
    return %arg0, %c0_i32 : i32, i32
  }
  func.func @transform_1(%arg0: i32) -> (i32, i32) {
    %c0_i32 = arith.constant 0 : i32
    %c0_i32_0 = arith.constant 0 : i32
    %c0_i32_1 = arith.constant 0 : i32
    return %c0_i32, %c0_i32_0 : i32, i32
  }
  func.func @transform_2(%arg0: i32) -> (i32, i32) {
    %c0_i32 = arith.constant 0 : i32
    %c0_i32_0 = arith.constant 0 : i32
    %c0_i32_1 = arith.constant 0 : i32
    return %c0_i32, %c0_i32_0 : i32, i32
  }
  func.func @transform_3(%arg0: i32) -> (i32, i32) {
    %c0_i32 = arith.constant 0 : i32
    %c0_i32_0 = arith.constant 0 : i32
    return %arg0, %c0_i32 : i32, i32
  }
}

</mosaic_0001>

<llo_original>
// kernel: tpu_custom_call.1
$region0: #{tpu_custom_call.1}
  #allocation0 [shape = 'u32[]', space=smem, size = 0x4, offset = 0x4, fixed_abs, tag = 'smem constant byte address 0x4 - core index']
  #allocation1 [shape = 'u32[144,128]{1,0:T(1,128)}', space=vmem, size = 0x12000, scoped, tag = 'internal scratch']
  %s0 = inlined_call_operand.hbm [shape: f32[256,256], index: 0, kind: input, shape index: {}]
  %s1 = inlined_call_operand.vmem [shape: f32[1,256], index: 1, kind: input, shape index: {}]
  %s2 = inlined_call_operand.vmem [shape: f32[1,256], index: 2, kind: input, shape index: {}]
  %s3 = inlined_call_operand.hbm [shape: f32[256,256], index: 3, kind: output, shape index: {}]
  %s4 = sld [smem:[#allocation0]]
  $region49: #{tpu_custom_call.1} parent=0
    _
  %s6 = ssub.s32 1, %s4
  %s7 = scalar_select 0, %s6, %s4
  $region1: #{tpu_custom_call.1} parent=0
    #allocation2 [shape = 'u8[131072]{0}', space=vmem, size = 0x20000, scoped, tag = 'input window, operand 0']
    #allocation3 [shape = 's32[2]{0}', space=sflag, size = 0x8, scoped, tag = 'scoped memory for tpu_custom_call.1']
    #allocation4 [shape = 's32[2]{0}', space=sflag, size = 0x8, scoped, tag = 'scoped memory for tpu_custom_call.1']
    #allocation5 [shape = 'u8[131072]{0}', space=vmem, size = 0x20000, scoped, tag = 'output window, operand 0']
    %8 = vsyncpa [#allocation3], 0
    %s9 = scalar_lea.sflag [#allocation3], 1
    %10 = vsyncpa %s9, 0
    %11 = vsyncpa [#allocation4], 0
    %s12 = scalar_lea.sflag [#allocation4], 1
    %13 = vsyncpa %s12, 0
    loop: start=0, step=1, limit=6
    $region2: #{tpu_custom_call.1} parent=1 // loop_pre_header
      _
    $region3: #{tpu_custom_call.1} parent=1 // loop_header
      %s15 = sphi 0, %s19
      %p16 = scmp.ge.s32.totalorder %s15, 6
      %s25 = sphi 0, %s27
      %s28 = sphi 0, %s25
      %s29 = sphi 0, %s28
      %s45 = sphi 0, %s29
      %s49 = sphi 0, %s49
      %s51 = sphi 0, %s49
      %s52 = sphi 0, %s51
      %s66 = sphi 0, %s52
      %s70 = sphi 0, %s70
      %s72 = sphi 0, %s70
      %s73 = sphi 0, %s72
      %s87 = sphi 0, %s73
      %s93 = sphi 0, %s95
      %s96 = sphi 0, %s93
      %s97 = sphi 0, %s96
      %s113 = sphi 0, %s97
    $region4: #{tpu_custom_call.1} parent=1 // loop_header_branch
      %18 = sbr.rel (%p16) target = $region8
    $region5: #{tpu_custom_call.1} parent=1 // loop_body
      %s20 = ssub.s32 %s15, 1
      %s21 = ssub.s32 %s15, 2
      %s22 = sadd.s32 %s15, 1
      %s23 = ssub.s32 %s15, %s22
      %p24 = scmp.eq.s32.totalorder %s23, 0
      %s26 = sadd.s32 %s25, 1
      %s27 = scalar_select %p24, %s25, %s26
      %p30 = pneg %p24
      %p31 = scmp.eq.s32.totalorder %s15, 3
      %p32 = por %p30, %p31
      %p33 = scmp.ne.s32.totalorder %s25, %s28
      %p34 = scmp.eq.s32.totalorder %s15, 0
      %p35 = por %p33, %p34
      %p36 = scmp.ne.s32.totalorder %s25, %s28
      %p37 = scmp.eq.s32.totalorder %s20, 3
      %p38 = por %p36, %p37
      %p39 = scmp.ne.s32.totalorder %s28, %s29
      %p40 = scmp.eq.s32.totalorder %s20, 0
      %p41 = por %p39, %p40
      %p42 = scmp.ne.s32.totalorder %s28, %s29
      %p43 = scmp.eq.s32.totalorder %s21, 3
      %p44 = por %p42, %p43
      %p46 = scmp.ne.s32.totalorder %s29, %s45
      %p47 = scmp.eq.s32.totalorder %s21, 0
      %p48 = por %p46, %p47
      %s50 = sadd.s32 %s49, 1
      %p53 = scmp.eq.s32.totalorder %s15, 3
      %p54 = scmp.ne.s32.totalorder %s49, %s51
      %p55 = scmp.eq.s32.totalorder %s15, 0
      %p56 = por %p54, %p55
      %p57 = scmp.ne.s32.totalorder %s49, %s51
      %p58 = scmp.eq.s32.totalorder %s20, 3
      %p59 = por %p57, %p58
      %p60 = scmp.ne.s32.totalorder %s51, %s52
      %p61 = scmp.eq.s32.totalorder %s20, 0
      %p62 = por %p60, %p61
      %p63 = scmp.ne.s32.totalorder %s51, %s52
      %p64 = scmp.eq.s32.totalorder %s21, 3
      %p65 = por %p63, %p64
      %p67 = scmp.ne.s32.totalorder %s52, %s66
      %p68 = scmp.eq.s32.totalorder %s21, 0
      %p69 = por %p67, %p68
      %s71 = sadd.s32 %s70, 1
      %p74 = scmp.eq.s32.totalorder %s15, 3
      %p75 = scmp.ne.s32.totalorder %s70, %s72
      %p76 = scmp.eq.s32.totalorder %s15, 0
      %p77 = por %p75, %p76
      %p78 = scmp.ne.s32.totalorder %s70, %s72
      %p79 = scmp.eq.s32.totalorder %s20, 3
      %p80 = por %p78, %p79
      %p81 = scmp.ne.s32.totalorder %s72, %s73
      %p82 = scmp.eq.s32.totalorder %s20, 0
      %p83 = por %p81, %p82
      %p84 = scmp.ne.s32.totalorder %s72, %s73
      %p85 = scmp.eq.s32.totalorder %s21, 3
      %p86 = por %p84, %p85
      %p88 = scmp.ne.s32.totalorder %s73, %s87
      %p89 = scmp.eq.s32.totalorder %s21, 0
      %p90 = por %p88, %p89
      %s91 = ssub.s32 %s15, %s22
      %p92 = scmp.eq.s32.totalorder %s91, 0
      %s94 = sadd.s32 %s93, 1
      %s95 = scalar_select %p92, %s93, %s94
      %p98 = pneg %p92
      %p99 = scmp.eq.s32.totalorder %s15, 3
      %p100 = por %p98, %p99
      %p101 = scmp.ne.s32.totalorder %s93, %s96
      %p102 = scmp.eq.s32.totalorder %s15, 0
      %p103 = por %p101, %p102
      %p104 = scmp.ne.s32.totalorder %s93, %s96
      %p105 = scmp.eq.s32.totalorder %s20, 3
      %p106 = por %p104, %p105
      %p107 = scmp.ne.s32.totalorder %s96, %s97
      %p108 = scmp.eq.s32.totalorder %s20, 0
      %p109 = por %p107, %p108
      %p110 = scmp.ne.s32.totalorder %s96, %s97
      %p111 = scmp.eq.s32.totalorder %s21, 3
      %p112 = por %p110, %p111
      %p114 = scmp.ne.s32.totalorder %s97, %s113
      %p115 = scmp.eq.s32.totalorder %s21, 0
      %p116 = por %p114, %p115
      %p117 = scmp.le.s32.totalorder 1, %s15
      %p118 = scmp.lt.s32.totalorder %s15, 5
      %p119 = pnand %p117, %p118
      %p120 = pneg %p119
      // Predicated region
      $region9: #{tpu_custom_call.1} parent=5 // pred_check
        _
      $region10: #{tpu_custom_call.1} parent=5 // pred_check_branch
        %122 = sbr.rel (%p119) target = $region12
      $region11: #{tpu_custom_call.1} parent=5 // pred_region
        %s123 = ssub.s32 %s15, 1
        // Predicated region
        $region13: #{tpu_custom_call.1} parent=11 // pred_check
          %p124 = pneg %p62
        $region14: #{tpu_custom_call.1} parent=11 // pred_check_branch
          %126 = sbr.rel (%p124) target = $region16
        $region15: #{tpu_custom_call.1} parent=11 // pred_region
          _
        $region16: #{tpu_custom_call.1} parent=11 // pred_fallthru
          _
        // Predicated region
        $region17: #{tpu_custom_call.1} parent=11 // pred_check
          %p127 = pneg %p83
        $region18: #{tpu_custom_call.1} parent=11 // pred_check_branch
          %129 = sbr.rel (%p127) target = $region20
        $region19: #{tpu_custom_call.1} parent=11 // pred_region
          _
        $region20: #{tpu_custom_call.1} parent=11 // pred_fallthru
          _
      $region12: #{tpu_custom_call.1} parent=5 // pred_fallthru
        _
      %p130 = scmp.lt.s32.totalorder %s15, 4
      // Predicated region
      $region21: #{tpu_custom_call.1} parent=5 // pred_check
        %p131 = pneg %p130
      $region22: #{tpu_custom_call.1} parent=5 // pred_check_branch
        %133 = sbr.rel (%p131) target = $region24
      $region23: #{tpu_custom_call.1} parent=5 // pred_region
        // Predicated region
        $region25: #{tpu_custom_call.1} parent=23 // pred_check
          %p134 = pneg %p35
        $region26: #{tpu_custom_call.1} parent=23 // pred_check_branch
          %136 = sbr.rel (%p134) target = $region28
        $region27: #{tpu_custom_call.1} parent=23 // pred_region
          %s137 = sand.u32 %s25, 1
          %s138 = scalar_lea.sflag [#allocation3], %s137
          %s139 = sand.u32 %s25, 1
          %s140 = smul.addr %s139, 128
          %s141 = scalar_lea.vmem [#allocation2], %s140
          %s142 = smul.u32 8, %s15
          %s144 = ssub.s32 2048, 2048
          %145 = vsyncadd %s138, %s144
          %s146 = smul.addr %s142, 2
          %s147 = smul.addr %s146, 128
          %s148 = scalar_lea.hbm %s0, %s147
          %s149 = sshll.u32 %s141, 4
          %s150 = int_to_ptr.vmem [resolvable:$true] %s149
          %155 = dma.hbm_to_vmem [thread:$0]  %s148, 2048, %s150, %s138, 256, 256, 16
        $region28: #{tpu_custom_call.1} parent=23 // pred_fallthru
          _
      $region24: #{tpu_custom_call.1} parent=5 // pred_fallthru
        _
      %p156 = scmp.le.s32.totalorder 1, %s15
      %p157 = scmp.lt.s32.totalorder %s15, 5
      %p158 = pnand %p156, %p157
      %p159 = pneg %p158
      // Predicated region
      $region29: #{tpu_custom_call.1} parent=5 // pred_check
        _
      $region30: #{tpu_custom_call.1} parent=5 // pred_check_branch
        %161 = sbr.rel (%p158) target = $region32
      $region31: #{tpu_custom_call.1} parent=5 // pred_region
        %s162 = ssub.s32 %s15, 1
        %s163 = sand.u32 %s28, 1
        %s164 = scalar_lea.sflag [#allocation3], %s163
        %s165 = sand.u32 %s28, 1
        %s166 = smul.addr %s165, 128
        %s167 = scalar_lea.vmem [#allocation2], %s166
        // Predicated region
        $region33: #{tpu_custom_call.1} parent=31 // pred_check
          %p168 = pneg %p41
        $region34: #{tpu_custom_call.1} parent=31 // pred_check_branch
          %170 = sbr.rel (%p168) target = $region36
        $region35: #{tpu_custom_call.1} parent=31 // pred_region
          %171 = dma.done %s164, 2048
        $region36: #{tpu_custom_call.1} parent=31 // pred_fallthru
          _
        %s172 = sand.u32 %s28, 1
        %s173 = scalar_lea.sflag [#allocation3], %s172
        %s174 = sand.u32 %s28, 1
        %s175 = smul.addr %s174, 128
        %s176 = scalar_lea.vmem [#allocation2], %s175
        %p177 = pneg %p41
        %p178 = pneg %p38
        %p179 = pneg %p62
        %p180 = pneg %p59
        %p181 = pneg %p83
        %p182 = pneg %p80
        %p183 = pneg %p109
        %p184 = pneg %p106
        %s185 = sand.u32 %s96, 1
        %s186 = scalar_lea.sflag [#allocation4], %s185
        %s187 = sand.u32 %s96, 1
        %s188 = smul.addr %s187, 128
        %s189 = scalar_lea.vmem [#allocation5], %s188
        %s190 = smul.u32 8, %s20
        %s191 = smul.u32 8, %s20
        %v192 = vlaneseq
        %v193 = vshrl.u32 %v192, 7
        %v194 = vadd.s32 %v193, 8
        %v195 = vadd.s32 %v193, 16
        %v196 = vadd.s32 %v193, 24
        %v197 = vadd.s32 %v193, 32
        %v198 = vadd.s32 %v193, 40
        %v199 = vadd.s32 %v193, 48
        %v200 = vadd.s32 %v193, 56
        %s201 = smul.u32 %s20, 64
        %v202 = vstv %s201
        %v203 = vadd.s32 %v202, %v193
        %v204 = vadd.s32 %v202, %v194
        %v205 = vadd.s32 %v202, %v195
        %v206 = vadd.s32 %v202, %v196
        %v207 = vadd.s32 %v202, %v197
        %v208 = vadd.s32 %v202, %v198
        %v209 = vadd.s32 %v202, %v199
        %v210 = vadd.s32 %v202, %v200
        %v211 = vcvt.s32.f32 %v203
        %v212 = vcvt.s32.f32 %v204
        %v213 = vcvt.s32.f32 %v205
        %v214 = vcvt.s32.f32 %v206
        %v215 = vcvt.s32.f32 %v207
        %v216 = vcvt.s32.f32 %v208
        %v217 = vcvt.s32.f32 %v209
        %v218 = vcvt.s32.f32 %v210
        %v219 = vld [vmem:[%s1] sm:$0x3]
        %v221 = vlaneseq
        %v222 = vshrl.u32 %v221, 7
        %v223 = vsub.s32 0, %v222
        %v224 = vrot.slane %v219, %v223
        %v225 = vlaneseq
        %v226 = vshrl.u32 %v225, 7
        %v227 = vsub.s32 1, %v226
        %v228 = vrot.slane %v219, %v227
        %v231 = vmul.f32 %v211, %v224
        %v232 = vmul.f32 %v211, %v228
        %v233 = vmul.f32 %v212, %v224
        %v234 = vmul.f32 %v212, %v228
        %v235 = vmul.f32 %v213, %v224
        %v236 = vmul.f32 %v213, %v228
        %v237 = vmul.f32 %v214, %v224
        %v238 = vmul.f32 %v214, %v228
        %v239 = vmul.f32 %v215, %v224
        %v240 = vmul.f32 %v215, %v228
        %v241 = vmul.f32 %v216, %v224
        %v242 = vmul.f32 %v216, %v228
        %v243 = vmul.f32 %v217, %v224
        %v244 = vmul.f32 %v217, %v228
        %v245 = vmul.f32 %v218, %v224
        %v246 = vmul.f32 %v218, %v228
        %v247 = vld [vmem:[%s2] sm:$0x3]
        %v249 = vlaneseq
        %v250 = vshrl.u32 %v249, 7
        %v251 = vsub.s32 0, %v250
        %v252 = vrot.slane %v247, %v251
        %v253 = vlaneseq
        %v254 = vshrl.u32 %v253, 7
        %v255 = vsub.s32 1, %v254
        %v256 = vrot.slane %v247, %v255
        %v259 = vadd.f32 %v231, %v252
        %v260 = vadd.f32 %v232, %v256
        %v261 = vadd.f32 %v233, %v252
        %v262 = vadd.f32 %v234, %v256
        %v263 = vadd.f32 %v235, %v252
        %v264 = vadd.f32 %v236, %v256
        %v265 = vadd.f32 %v237, %v252
        %v266 = vadd.f32 %v238, %v256
        %v267 = vadd.f32 %v239, %v252
        %v268 = vadd.f32 %v240, %v256
        %v269 = vadd.f32 %v241, %v252
        %v270 = vadd.f32 %v242, %v256
        %v271 = vadd.f32 %v243, %v252
        %v272 = vadd.f32 %v244, %v256
        %v273 = vadd.f32 %v245, %v252
        %v274 = vadd.f32 %v246, %v256
        %v275 = vld [vmem:[%s167] sm:$0xff]
        %v276 = vld [vmem:[%s167 + $0x8] sm:$0xff]
        %v277 = vld [vmem:[%s167 + $0x10] sm:$0xff]
        %v278 = vld [vmem:[%s167 + $0x18] sm:$0xff]
        %v279 = vld [vmem:[%s167 + $0x20] sm:$0xff]
        %v280 = vld [vmem:[%s167 + $0x28] sm:$0xff]
        %v281 = vld [vmem:[%s167 + $0x30] sm:$0xff]
        %v282 = vld [vmem:[%s167 + $0x38] sm:$0xff]
        %v283 = vld [vmem:[%s167 + $0x40] sm:$0xff]
        %v284 = vld [vmem:[%s167 + $0x48] sm:$0xff]
        %v285 = vld [vmem:[%s167 + $0x50] sm:$0xff]
        %v286 = vld [vmem:[%s167 + $0x58] sm:$0xff]
        %v287 = vld [vmem:[%s167 + $0x60] sm:$0xff]
        %v288 = vld [vmem:[%s167 + $0x68] sm:$0xff]
        %v289 = vld [vmem:[%s167 + $0x70] sm:$0xff]
        %v290 = vld [vmem:[%s167 + $0x78] sm:$0xff]
        %v291 = vand.u32 2147483647, %v259
        %vm292 = vcmp.le.f32.partialorder %v291, 0.7853982
        %vm293 = vcmp.lt.s32.totalorder %v259, 0
        %v294 = vand.u32 %v259, 2139095040
        %v295 = vshrl.u32 %v294, 23
        %v296 = vsub.s32 %v295, 127
        %v297 = vand.u32 2147483647, %v259
        %v298 = vand.u32 %v297, 8388607
        %v299 = vor.u32 %v298, 8388608
        %v300 = vsub.s32 0, %v299
        %v301 = vadd.s32 %v296, 1
        %vm302 = vcmp.gt.s32.totalorder %v301, 0
        %v303 = vsel %vm302, %v301, 0
        %v304 = vshrl.u32 %v303, 5
        %v305 = vand.u32 %v303, 31
        %v306 = vsub.s32 32, %v305
        %v307 = vshrl.u32 683565275, %v306
        %v308 = vshll.u32 683565275, %v305
        %v309 = vshrl.u32 2475754826, %v306
        %v310 = vor.u32 %v308, %v309
        %v311 = vshll.u32 2475754826, %v305
        %v312 = vshrl.u32 2131351028, %v306
        %v313 = vor.u32 %v311, %v312
        %v314 = vshll.u32 2131351028, %v305
        %v315 = vshrl.u32 2102212464, %v306
        %v316 = vor.u32 %v314, %v315
        %v317 = vshll.u32 2102212464, %v305
        %v318 = vshrl.u32 920167782, %v306
        %v319 = vor.u32 %v317, %v318
        %v320 = vshll.u32 920167782, %v305
        %v321 = vshrl.u32 1326507024, %v306
        %v322 = vor.u32 %v320, %v321
        %vm323 = vcmp.lt.s32.totalorder %v304, 1
        %vm324 = vcmp.lt.s32.totalorder %v304, 2
        %vm325 = vcmp.lt.s32.totalorder %v304, 3
        %vm326 = vcmp.lt.s32.totalorder %v304, 4
        %v327 = vsel %vm323, %v307, %v310
        %v328 = vsel %vm326, %v316, 2102212464
        %v329 = vsel %vm325, %v313, %v328
        %v330 = vsel %vm324, %v327, %v329
        %v331 = vsel %vm323, %v310, %v313
        %v332 = vsel %vm326, %v319, 920167782
        %v333 = vsel %vm325, %v316, %v332
        %v334 = vsel %vm324, %v331, %v333
        %v335 = vsel %vm323, %v313, %v316
        %v336 = vsel %vm326, %v322, 1326507024
        %v337 = vsel %vm325, %v319, %v336
        %v338 = vsel %vm324, %v335, %v337
        %v339 = vshll.u32 %v299, 8
        %v340 = vmul.u32.u64.compose %v339, %v338
        %v341 = vextract.low.u32 %v340
        %v342 = vextract.high.u32 %v340
        %v343 = vmul.u32.u64.compose %v339, %v334
        %v344 = vextract.low.u32 %v343
        %v345 = vextract.high.u32 %v343
        %v346 = vmul.u32 %v339, %v330
        %v347 = vadd.s32 %v342, %v344
        %vm348 = vc.u32 %v342, %v344
        %v349 = vadd.s32 %v345, 1
        %v350 = vsel %vm348, %v349, %v345
        %v351 = vadd.s32 %v346, %v350
        %v352 = vadd.s32 %v351, 536870912
        %v353 = vshrl.u32 %v352, 30
        %v354 = vshll.u32 %v353, 30
        %v355 = vsub.s32 %v351, %v354
        %vm356 = vcmp.lt.s32.totalorder %v355, 0
        %v357 = vsub.s32 0, %v355
        %v358 = vsel %vm356, %v357, %v355
        %v359 = vclz %v358
        %v360 = vsub.s32 %v359, 2
        %vm361 = vcmp.gt.s32.totalorder 0, %v360
        %v362 = vsel %vm361, 0, %v360
        %v363 = vsub.s32 32, %v362
        %v364 = vshll.u32 %v355, %v362
        %v365 = vshrl.u32 %v347, %v363
        %v366 = vor.u32 %v364, %v365
        %v367 = vsub.s32 4294967266, %v362
        %v368 = vadd.s32 %v367, 127
        %v369 = vshll.u32 %v368, 23
        %v370 = vor.u32 4788187, %v369
        %v371 = vand.u32 2147483647, %v370
        %v373 = vcvt.s32.f32 %v366
        %v374 = vmul.f32 %v373, %v371
        %v375 = vxor.u32 %v374, 2147483648
        %v376 = vsel %vm293, %v375, %v374
        %v377 = vsub.s32 4, %v353
        %v378 = vsel %vm293, %v377, %v353
        %v379 = vsel %vm292, %v259, %v376
        %v380 = vsel %vm292, 0, %v378
        %v381 = vcosq.f32.pop %v379
        %v382 = vsinq.f32.pop %v379
        %vm383 = vweird.f32 %v259
        %v384 = vadd.s32 %v380, 3
        %v385 = vand.u32 %v384, 3
        %vm386 = vcmp.lt.s32.totalorder %v385, 2
        %vm387 = vcmp.eq.s32.totalorder %v385, 0
        %v388 = vxor.u32 %v382, 2147483648
        %v389 = vsel %vm387, %v381, %v388
        %vm390 = vcmp.eq.s32.totalorder %v385, 2
        %v391 = vxor.u32 %v381, 2147483648
        %v392 = vsel %vm390, %v391, %v382
        %v393 = vsel %vm386, %v389, %v392
        %v394 = vsel %vm383, nan, %v393
        %v395 = vand.u32 2147483647, %v260
        %vm396 = vcmp.le.f32.partialorder %v395, 0.7853982
        %vm397 = vcmp.lt.s32.totalorder %v260, 0
        %v398 = vand.u32 %v260, 2139095040
        %v399 = vshrl.u32 %v398, 23
        %v400 = vsub.s32 %v399, 127
        %v401 = vand.u32 2147483647, %v260
        %v402 = vand.u32 %v401, 8388607
        %v403 = vor.u32 %v402, 8388608
        %v404 = vsub.s32 0, %v403
        %v405 = vadd.s32 %v400, 1
        %vm406 = vcmp.gt.s32.totalorder %v405, 0
        %v407 = vsel %vm406, %v405, 0
        %v408 = vshrl.u32 %v407, 5
        %v409 = vand.u32 %v407, 31
        %v410 = vsub.s32 32, %v409
        %v411 = vshrl.u32 683565275, %v410
        %v412 = vshll.u32 683565275, %v409
        %v413 = vshrl.u32 2475754826, %v410
        %v414 = vor.u32 %v412, %v413
        %v415 = vshll.u32 2475754826, %v409
        %v416 = vshrl.u32 2131351028, %v410
        %v417 = vor.u32 %v415, %v416
        %v418 = vshll.u32 2131351028, %v409
        %v419 = vshrl.u32 2102212464, %v410
        %v420 = vor.u32 %v418, %v419
        %v421 = vshll.u32 2102212464, %v409
        %v422 = vshrl.u32 920167782, %v410
        %v423 = vor.u32 %v421, %v422
        %v424 = vshll.u32 920167782, %v409
        %v425 = vshrl.u32 1326507024, %v410
        %v426 = vor.u32 %v424, %v425
        %vm427 = vcmp.lt.s32.totalorder %v408, 1
        %vm428 = vcmp.lt.s32.totalorder %v408, 2
        %vm429 = vcmp.lt.s32.totalorder %v408, 3
        %vm430 = vcmp.lt.s32.totalorder %v408, 4
        %v431 = vsel %vm427, %v411, %v414
        %v432 = vsel %vm430, %v420, 2102212464
        %v433 = vsel %vm429, %v417, %v432
        %v434 = vsel %vm428, %v431, %v433
        %v435 = vsel %vm427, %v414, %v417
        %v436 = vsel %vm430, %v423, 920167782
        %v437 = vsel %vm429, %v420, %v436
        %v438 = vsel %vm428, %v435, %v437
        %v439 = vsel %vm427, %v417, %v420
        %v440 = vsel %vm430, %v426, 1326507024
        %v441 = vsel %vm429, %v423, %v440
        %v442 = vsel %vm428, %v439, %v441
        %v443 = vshll.u32 %v403, 8
        %v444 = vmul.u32.u64.compose %v443, %v442
        %v445 = vextract.low.u32 %v444
        %v446 = vextract.high.u32 %v444
        %v447 = vmul.u32.u64.compose %v443, %v438
        %v448 = vextract.low.u32 %v447
        %v449 = vextract.high.u32 %v447
        %v450 = vmul.u32 %v443, %v434
        %v451 = vadd.s32 %v446, %v448
        %vm452 = vc.u32 %v446, %v448
        %v453 = vadd.s32 %v449, 1
        %v454 = vsel %vm452, %v453, %v449
        %v455 = vadd.s32 %v450, %v454
        %v456 = vadd.s32 %v455, 536870912
        %v457 = vshrl.u32 %v456, 30
        %v458 = vshll.u32 %v457, 30
        %v459 = vsub.s32 %v455, %v458
        %vm460 = vcmp.lt.s32.totalorder %v459, 0
        %v461 = vsub.s32 0, %v459
        %v462 = vsel %vm460, %v461, %v459
        %v463 = vclz %v462
        %v464 = vsub.s32 %v463, 2
        %vm465 = vcmp.gt.s32.totalorder 0, %v464
        %v466 = vsel %vm465, 0, %v464
        %v467 = vsub.s32 32, %v466
        %v468 = vshll.u32 %v459, %v466
        %v469 = vshrl.u32 %v451, %v467
        %v470 = vor.u32 %v468, %v469
        %v471 = vsub.s32 4294967266, %v466
        %v472 = vadd.s32 %v471, 127
        %v473 = vshll.u32 %v472, 23
        %v474 = vor.u32 4788187, %v473
        %v475 = vand.u32 2147483647, %v474
        %v477 = vcvt.s32.f32 %v470
        %v478 = vmul.f32 %v477, %v475
        %v479 = vxor.u32 %v478, 2147483648
        %v480 = vsel %vm397, %v479, %v478
        %v481 = vsub.s32 4, %v457
        %v482 = vsel %vm397, %v481, %v457
        %v483 = vsel %vm396, %v260, %v480
        %v484 = vsel %vm396, 0, %v482
        %v485 = vcosq.f32.pop %v483
        %v486 = vsinq.f32.pop %v483
        %vm487 = vweird.f32 %v260
        %v488 = vadd.s32 %v484, 3
        %v489 = vand.u32 %v488, 3
        %vm490 = vcmp.lt.s32.totalorder %v489, 2
        %vm491 = vcmp.eq.s32.totalorder %v489, 0
        %v492 = vxor.u32 %v486, 2147483648
        %v493 = vsel %vm491, %v485, %v492
        %vm494 = vcmp.eq.s32.totalorder %v489, 2
        %v495 = vxor.u32 %v485, 2147483648
        %v496 = vsel %vm494, %v495, %v486
        %v497 = vsel %vm490, %v493, %v496
        %v498 = vsel %vm487, nan, %v497
        %v499 = vand.u32 2147483647, %v261
        %vm500 = vcmp.le.f32.partialorder %v499, 0.7853982
        %vm501 = vcmp.lt.s32.totalorder %v261, 0
        %v502 = vand.u32 %v261, 2139095040
        %v503 = vshrl.u32 %v502, 23
        %v504 = vsub.s32 %v503, 127
        %v505 = vand.u32 2147483647, %v261
        %v506 = vand.u32 %v505, 8388607
        %v507 = vor.u32 %v506, 8388608
        %v508 = vsub.s32 0, %v507
        %v509 = vadd.s32 %v504, 1
        %vm510 = vcmp.gt.s32.totalorder %v509, 0
        %v511 = vsel %vm510, %v509, 0
        %v512 = vshrl.u32 %v511, 5
        %v513 = vand.u32 %v511, 31
        %v514 = vsub.s32 32, %v513
        %v515 = vshrl.u32 683565275, %v514
        %v516 = vshll.u32 683565275, %v513
        %v517 = vshrl.u32 2475754826, %v514
        %v518 = vor.u32 %v516, %v517
        %v519 = vshll.u32 2475754826, %v513
        %v520 = vshrl.u32 2131351028, %v514
        %v521 = vor.u32 %v519, %v520
        %v522 = vshll.u32 2131351028, %v513
        %v523 = vshrl.u32 2102212464, %v514
        %v524 = vor.u32 %v522, %v523
        %v525 = vshll.u32 2102212464, %v513
        %v526 = vshrl.u32 920167782, %v514
        %v527 = vor.u32 %v525, %v526
        %v528 = vshll.u32 920167782, %v513
        %v529 = vshrl.u32 1326507024, %v514
        %v530 = vor.u32 %v528, %v529
        %vm531 = vcmp.lt.s32.totalorder %v512, 1
        %vm532 = vcmp.lt.s32.totalorder %v512, 2
        %vm533 = vcmp.lt.s32.totalorder %v512, 3
        %vm534 = vcmp.lt.s32.totalorder %v512, 4
        %v535 = vsel %vm531, %v515, %v518
        %v536 = vsel %vm534, %v524, 2102212464
        %v537 = vsel %vm533, %v521, %v536
        %v538 = vsel %vm532, %v535, %v537
        %v539 = vsel %vm531, %v518, %v521
        %v540 = vsel %vm534, %v527, 920167782
        %v541 = vsel %vm533, %v524, %v540
        %v542 = vsel %vm532, %v539, %v541
        %v543 = vsel %vm531, %v521, %v524
        %v544 = vsel %vm534, %v530, 1326507024
        %v545 = vsel %vm533, %v527, %v544
        %v546 = vsel %vm532, %v543, %v545
        %v547 = vshll.u32 %v507, 8
        %v548 = vmul.u32.u64.compose %v547, %v546
        %v549 = vextract.low.u32 %v548
        %v550 = vextract.high.u32 %v548
        %v551 = vmul.u32.u64.compose %v547, %v542
        %v552 = vextract.low.u32 %v551
        %v553 = vextract.high.u32 %v551
        %v554 = vmul.u32 %v547, %v538
        %v555 = vadd.s32 %v550, %v552
        %vm556 = vc.u32 %v550, %v552
        %v557 = vadd.s32 %v553, 1
        %v558 = vsel %vm556, %v557, %v553
        %v559 = vadd.s32 %v554, %v558
        %v560 = vadd.s32 %v559, 536870912
        %v561 = vshrl.u32 %v560, 30
        %v562 = vshll.u32 %v561, 30
        %v563 = vsub.s32 %v559, %v562
        %vm564 = vcmp.lt.s32.totalorder %v563, 0
        %v565 = vsub.s32 0, %v563
        %v566 = vsel %vm564, %v565, %v563
        %v567 = vclz %v566
        %v568 = vsub.s32 %v567, 2
        %vm569 = vcmp.gt.s32.totalorder 0, %v568
        %v570 = vsel %vm569, 0, %v568
        %v571 = vsub.s32 32, %v570
        %v572 = vshll.u32 %v563, %v570
        %v573 = vshrl.u32 %v555, %v571
        %v574 = vor.u32 %v572, %v573
        %v575 = vsub.s32 4294967266, %v570
        %v576 = vadd.s32 %v575, 127
        %v577 = vshll.u32 %v576, 23
        %v578 = vor.u32 4788187, %v577
        %v579 = vand.u32 2147483647, %v578
        %v581 = vcvt.s32.f32 %v574
        %v582 = vmul.f32 %v581, %v579
        %v583 = vxor.u32 %v582, 2147483648
        %v584 = vsel %vm501, %v583, %v582
        %v585 = vsub.s32 4, %v561
        %v586 = vsel %vm501, %v585, %v561
        %v587 = vsel %vm500, %v261, %v584
        %v588 = vsel %vm500, 0, %v586
        %v589 = vcosq.f32.pop %v587
        %v590 = vsinq.f32.pop %v587
        %vm591 = vweird.f32 %v261
        %v592 = vadd.s32 %v588, 3
        %v593 = vand.u32 %v592, 3
        %vm594 = vcmp.lt.s32.totalorder %v593, 2
        %vm595 = vcmp.eq.s32.totalorder %v593, 0
        %v596 = vxor.u32 %v590, 2147483648
        %v597 = vsel %vm595, %v589, %v596
        %vm598 = vcmp.eq.s32.totalorder %v593, 2
        %v599 = vxor.u32 %v589, 2147483648
        %v600 = vsel %vm598, %v599, %v590
        %v601 = vsel %vm594, %v597, %v600
        %v602 = vsel %vm591, nan, %v601
        %v603 = vand.u32 2147483647, %v262
        %vm604 = vcmp.le.f32.partialorder %v603, 0.7853982
        %vm605 = vcmp.lt.s32.totalorder %v262, 0
        %v606 = vand.u32 %v262, 2139095040
        %v607 = vshrl.u32 %v606, 23
        %v608 = vsub.s32 %v607, 127
        %v609 = vand.u32 2147483647, %v262
        %v610 = vand.u32 %v609, 8388607
        %v611 = vor.u32 %v610, 8388608
        %v612 = vsub.s32 0, %v611
        %v613 = vadd.s32 %v608, 1
        %vm614 = vcmp.gt.s32.totalorder %v613, 0
        %v615 = vsel %vm614, %v613, 0
        %v616 = vshrl.u32 %v615, 5
        %v617 = vand.u32 %v615, 31
        %v618 = vsub.s32 32, %v617
        %v619 = vshrl.u32 683565275, %v618
        %v620 = vshll.u32 683565275, %v617
        %v621 = vshrl.u32 2475754826, %v618
        %v622 = vor.u32 %v620, %v621
        %v623 = vshll.u32 2475754826, %v617
        %v624 = vshrl.u32 2131351028, %v618
        %v625 = vor.u32 %v623, %v624
        %v626 = vshll.u32 2131351028, %v617
        %v627 = vshrl.u32 2102212464, %v618
        %v628 = vor.u32 %v626, %v627
        %v629 = vshll.u32 2102212464, %v617
        %v630 = vshrl.u32 920167782, %v618
        %v631 = vor.u32 %v629, %v630
        %v632 = vshll.u32 920167782, %v617
        %v633 = vshrl.u32 1326507024, %v618
        %v634 = vor.u32 %v632, %v633
        %vm635 = vcmp.lt.s32.totalorder %v616, 1
        %vm636 = vcmp.lt.s32.totalorder %v616, 2
        %vm637 = vcmp.lt.s32.totalorder %v616, 3
        %vm638 = vcmp.lt.s32.totalorder %v616, 4
        %v639 = vsel %vm635, %v619, %v622
        %v640 = vsel %vm638, %v628, 2102212464
        %v641 = vsel %vm637, %v625, %v640
        %v642 = vsel %vm636, %v639, %v641
        %v643 = vsel %vm635, %v622, %v625
        %v644 = vsel %vm638, %v631, 920167782
        %v645 = vsel %vm637, %v628, %v644
        %v646 = vsel %vm636, %v643, %v645
        %v647 = vsel %vm635, %v625, %v628
        %v648 = vsel %vm638, %v634, 1326507024
        %v649 = vsel %vm637, %v631, %v648
        %v650 = vsel %vm636, %v647, %v649
        %v651 = vshll.u32 %v611, 8
        %v652 = vmul.u32.u64.compose %v651, %v650
        %v653 = vextract.low.u32 %v652
        %v654 = vextract.high.u32 %v652
        %v655 = vmul.u32.u64.compose %v651, %v646
        %v656 = vextract.low.u32 %v655
        %v657 = vextract.high.u32 %v655
        %v658 = vmul.u32 %v651, %v642
        %v659 = vadd.s32 %v654, %v656
        %vm660 = vc.u32 %v654, %v656
        %v661 = vadd.s32 %v657, 1
        %v662 = vsel %vm660, %v661, %v657
        %v663 = vadd.s32 %v658, %v662
        %v664 = vadd.s32 %v663, 536870912
        %v665 = vshrl.u32 %v664, 30
        %v666 = vshll.u32 %v665, 30
        %v667 = vsub.s32 %v663, %v666
        %vm668 = vcmp.lt.s32.totalorder %v667, 0
        %v669 = vsub.s32 0, %v667
        %v670 = vsel %vm668, %v669, %v667
        %v671 = vclz %v670
        %v672 = vsub.s32 %v671, 2
        %vm673 = vcmp.gt.s32.totalorder 0, %v672
        %v674 = vsel %vm673, 0, %v672
        %v675 = vsub.s32 32, %v674
        %v676 = vshll.u32 %v667, %v674
        %v677 = vshrl.u32 %v659, %v675
        %v678 = vor.u32 %v676, %v677
        %v679 = vsub.s32 4294967266, %v674
        %v680 = vadd.s32 %v679, 127
        %v681 = vshll.u32 %v680, 23
        %v682 = vor.u32 4788187, %v681
        %v683 = vand.u32 2147483647, %v682
        %v685 = vcvt.s32.f32 %v678
        %v686 = vmul.f32 %v685, %v683
        %v687 = vxor.u32 %v686, 2147483648
        %v688 = vsel %vm605, %v687, %v686
        %v689 = vsub.s32 4, %v665
        %v690 = vsel %vm605, %v689, %v665
        %v691 = vsel %vm604, %v262, %v688
        %v692 = vsel %vm604, 0, %v690
        %v693 = vcosq.f32.pop %v691
        %v694 = vsinq.f32.pop %v691
        %vm695 = vweird.f32 %v262
        %v696 = vadd.s32 %v692, 3
        %v697 = vand.u32 %v696, 3
        %vm698 = vcmp.lt.s32.totalorder %v697, 2
        %vm699 = vcmp.eq.s32.totalorder %v697, 0
        %v700 = vxor.u32 %v694, 2147483648
        %v701 = vsel %vm699, %v693, %v700
        %vm702 = vcmp.eq.s32.totalorder %v697, 2
        %v703 = vxor.u32 %v693, 2147483648
        %v704 = vsel %vm702, %v703, %v694
        %v705 = vsel %vm698, %v701, %v704
        %v706 = vsel %vm695, nan, %v705
        %v707 = vand.u32 2147483647, %v263
        %vm708 = vcmp.le.f32.partialorder %v707, 0.7853982
        %vm709 = vcmp.lt.s32.totalorder %v263, 0
        %v710 = vand.u32 %v263, 2139095040
        %v711 = vshrl.u32 %v710, 23
        %v712 = vsub.s32 %v711, 127
        %v713 = vand.u32 2147483647, %v263
        %v714 = vand.u32 %v713, 8388607
        %v715 = vor.u32 %v714, 8388608
        %v716 = vsub.s32 0, %v715
        %v717 = vadd.s32 %v712, 1
        %vm718 = vcmp.gt.s32.totalorder %v717, 0
        %v719 = vsel %vm718, %v717, 0
        %v720 = vshrl.u32 %v719, 5
        %v721 = vand.u32 %v719, 31
        %v722 = vsub.s32 32, %v721
        %v723 = vshrl.u32 683565275, %v722
        %v724 = vshll.u32 683565275, %v721
        %v725 = vshrl.u32 2475754826, %v722
        %v726 = vor.u32 %v724, %v725
        %v727 = vshll.u32 2475754826, %v721
        %v728 = vshrl.u32 2131351028, %v722
        %v729 = vor.u32 %v727, %v728
        %v730 = vshll.u32 2131351028, %v721
        %v731 = vshrl.u32 2102212464, %v722
        %v732 = vor.u32 %v730, %v731
        %v733 = vshll.u32 2102212464, %v721
        %v734 = vshrl.u32 920167782, %v722
        %v735 = vor.u32 %v733, %v734
        %v736 = vshll.u32 920167782, %v721
        %v737 = vshrl.u32 1326507024, %v722
        %v738 = vor.u32 %v736, %v737
        %vm739 = vcmp.lt.s32.totalorder %v720, 1
        %vm740 = vcmp.lt.s32.totalorder %v720, 2
        %vm741 = vcmp.lt.s32.totalorder %v720, 3
        %vm742 = vcmp.lt.s32.totalorder %v720, 4
        %v743 = vsel %vm739, %v723, %v726
        %v744 = vsel %vm742, %v732, 2102212464
        %v745 = vsel %vm741, %v729, %v744
        %v746 = vsel %vm740, %v743, %v745
        %v747 = vsel %vm739, %v726, %v729
        %v748 = vsel %vm742, %v735, 920167782
        %v749 = vsel %vm741, %v732, %v748
        %v750 = vsel %vm740, %v747, %v749
        %v751 = vsel %vm739, %v729, %v732
        %v752 = vsel %vm742, %v738, 1326507024
        %v753 = vsel %vm741, %v735, %v752
        %v754 = vsel %vm740, %v751, %v753
        %v755 = vshll.u32 %v715, 8
        %v756 = vmul.u32.u64.compose %v755, %v754
        %v757 = vextract.low.u32 %v756
        %v758 = vextract.high.u32 %v756
        %v759 = vmul.u32.u64.compose %v755, %v750
        %v760 = vextract.low.u32 %v759
        %v761 = vextract.high.u32 %v759
        %v762 = vmul.u32 %v755, %v746
        %v763 = vadd.s32 %v758, %v760
        %vm764 = vc.u32 %v758, %v760
        %v765 = vadd.s32 %v761, 1
        %v766 = vsel %vm764, %v765, %v761
        %v767 = vadd.s32 %v762, %v766
        %v768 = vadd.s32 %v767, 536870912
        %v769 = vshrl.u32 %v768, 30
        %v770 = vshll.u32 %v769, 30
        %v771 = vsub.s32 %v767, %v770
        %vm772 = vcmp.lt.s32.totalorder %v771, 0
        %v773 = vsub.s32 0, %v771
        %v774 = vsel %vm772, %v773, %v771
        %v775 = vclz %v774
        %v776 = vsub.s32 %v775, 2
        %vm777 = vcmp.gt.s32.totalorder 0, %v776
        %v778 = vsel %vm777, 0, %v776
        %v779 = vsub.s32 32, %v778
        %v780 = vshll.u32 %v771, %v778
        %v781 = vshrl.u32 %v763, %v779
        %v782 = vor.u32 %v780, %v781
        %v783 = vsub.s32 4294967266, %v778
        %v784 = vadd.s32 %v783, 127
        %v785 = vshll.u32 %v784, 23
        %v786 = vor.u32 4788187, %v785
        %v787 = vand.u32 2147483647, %v786
        %v789 = vcvt.s32.f32 %v782
        %v790 = vmul.f32 %v789, %v787
        %v791 = vxor.u32 %v790, 2147483648
        %v792 = vsel %vm709, %v791, %v790
        %v793 = vsub.s32 4, %v769
        %v794 = vsel %vm709, %v793, %v769
        %v795 = vsel %vm708, %v263, %v792
        %v796 = vsel %vm708, 0, %v794
        %v797 = vcosq.f32.pop %v795
        %v798 = vsinq.f32.pop %v795
        %vm799 = vweird.f32 %v263
        %v800 = vadd.s32 %v796, 3
        %v801 = vand.u32 %v800, 3
        %vm802 = vcmp.lt.s32.totalorder %v801, 2
        %vm803 = vcmp.eq.s32.totalorder %v801, 0
        %v804 = vxor.u32 %v798, 2147483648
        %v805 = vsel %vm803, %v797, %v804
        %vm806 = vcmp.eq.s32.totalorder %v801, 2
        %v807 = vxor.u32 %v797, 2147483648
        %v808 = vsel %vm806, %v807, %v798
        %v809 = vsel %vm802, %v805, %v808
        %v810 = vsel %vm799, nan, %v809
        %v811 = vand.u32 2147483647, %v264
        %vm812 = vcmp.le.f32.partialorder %v811, 0.7853982
        %vm813 = vcmp.lt.s32.totalorder %v264, 0
        %v814 = vand.u32 %v264, 2139095040
        %v815 = vshrl.u32 %v814, 23
        %v816 = vsub.s32 %v815, 127
        %v817 = vand.u32 2147483647, %v264
        %v818 = vand.u32 %v817, 8388607
        %v819 = vor.u32 %v818, 8388608
        %v820 = vsub.s32 0, %v819
        %v821 = vadd.s32 %v816, 1
        %vm822 = vcmp.gt.s32.totalorder %v821, 0
        %v823 = vsel %vm822, %v821, 0
        %v824 = vshrl.u32 %v823, 5
        %v825 = vand.u32 %v823, 31
        %v826 = vsub.s32 32, %v825
        %v827 = vshrl.u32 683565275, %v826
        %v828 = vshll.u32 683565275, %v825
        %v829 = vshrl.u32 2475754826, %v826
        %v830 = vor.u32 %v828, %v829
        %v831 = vshll.u32 2475754826, %v825
        %v832 = vshrl.u32 2131351028, %v826
        %v833 = vor.u32 %v831, %v832
        %v834 = vshll.u32 2131351028, %v825
        %v835 = vshrl.u32 2102212464, %v826
        %v836 = vor.u32 %v834, %v835
        %v837 = vshll.u32 2102212464, %v825
        %v838 = vshrl.u32 920167782, %v826
        %v839 = vor.u32 %v837, %v838
        %v840 = vshll.u32 920167782, %v825
        %v841 = vshrl.u32 1326507024, %v826
        %v842 = vor.u32 %v840, %v841
        %vm843 = vcmp.lt.s32.totalorder %v824, 1
        %vm844 = vcmp.lt.s32.totalorder %v824, 2
        %vm845 = vcmp.lt.s32.totalorder %v824, 3
        %vm846 = vcmp.lt.s32.totalorder %v824, 4
        %v847 = vsel %vm843, %v827, %v830
        %v848 = vsel %vm846, %v836, 2102212464
        %v849 = vsel %vm845, %v833, %v848
        %v850 = vsel %vm844, %v847, %v849
        %v851 = vsel %vm843, %v830, %v833
        %v852 = vsel %vm846, %v839, 920167782
        %v853 = vsel %vm845, %v836, %v852
        %v854 = vsel %vm844, %v851, %v853
        %v855 = vsel %vm843, %v833, %v836
        %v856 = vsel %vm846, %v842, 1326507024
        %v857 = vsel %vm845, %v839, %v856
        %v858 = vsel %vm844, %v855, %v857
        %v859 = vshll.u32 %v819, 8
        %v860 = vmul.u32.u64.compose %v859, %v858
        %v861 = vextract.low.u32 %v860
        %v862 = vextract.high.u32 %v860
        %v863 = vmul.u32.u64.compose %v859, %v854
        %v864 = vextract.low.u32 %v863
        %v865 = vextract.high.u32 %v863
        %v866 = vmul.u32 %v859, %v850
        %v867 = vadd.s32 %v862, %v864
        %vm868 = vc.u32 %v862, %v864
        %v869 = vadd.s32 %v865, 1
        %v870 = vsel %vm868, %v869, %v865
        %v871 = vadd.s32 %v866, %v870
        %v872 = vadd.s32 %v871, 536870912
        %v873 = vshrl.u32 %v872, 30
        %v874 = vshll.u32 %v873, 30
        %v875 = vsub.s32 %v871, %v874
        %vm876 = vcmp.lt.s32.totalorder %v875, 0
        %v877 = vsub.s32 0, %v875
        %v878 = vsel %vm876, %v877, %v875
        %v879 = vclz %v878
        %v880 = vsub.s32 %v879, 2
        %vm881 = vcmp.gt.s32.totalorder 0, %v880
        %v882 = vsel %vm881, 0, %v880
        %v883 = vsub.s32 32, %v882
        %v884 = vshll.u32 %v875, %v882
        %v885 = vshrl.u32 %v867, %v883
        %v886 = vor.u32 %v884, %v885
        %v887 = vsub.s32 4294967266, %v882
        %v888 = vadd.s32 %v887, 127
        %v889 = vshll.u32 %v888, 23
        %v890 = vor.u32 4788187, %v889
        %v891 = vand.u32 2147483647, %v890
        %v893 = vcvt.s32.f32 %v886
        %v894 = vmul.f32 %v893, %v891
        %v895 = vxor.u32 %v894, 2147483648
        %v896 = vsel %vm813, %v895, %v894
        %v897 = vsub.s32 4, %v873
        %v898 = vsel %vm813, %v897, %v873
        %v899 = vsel %vm812, %v264, %v896
        %v900 = vsel %vm812, 0, %v898
        %v901 = vcosq.f32.pop %v899
        %v902 = vsinq.f32.pop %v899
        %vm903 = vweird.f32 %v264
        %v904 = vadd.s32 %v900, 3
        %v905 = vand.u32 %v904, 3
        %vm906 = vcmp.lt.s32.totalorder %v905, 2
        %vm907 = vcmp.eq.s32.totalorder %v905, 0
        %v908 = vxor.u32 %v902, 2147483648
        %v909 = vsel %vm907, %v901, %v908
        %vm910 = vcmp.eq.s32.totalorder %v905, 2
        %v911 = vxor.u32 %v901, 2147483648
        %v912 = vsel %vm910, %v911, %v902
        %v913 = vsel %vm906, %v909, %v912
        %v914 = vsel %vm903, nan, %v913
        %v915 = vand.u32 2147483647, %v265
        %vm916 = vcmp.le.f32.partialorder %v915, 0.7853982
        %vm917 = vcmp.lt.s32.totalorder %v265, 0
        %v918 = vand.u32 %v265, 2139095040
        %v919 = vshrl.u32 %v918, 23
        %v920 = vsub.s32 %v919, 127
        %v921 = vand.u32 2147483647, %v265
        %v922 = vand.u32 %v921, 8388607
        %v923 = vor.u32 %v922, 8388608
        %v924 = vsub.s32 0, %v923
        %v925 = vadd.s32 %v920, 1
        %vm926 = vcmp.gt.s32.totalorder %v925, 0
        %v927 = vsel %vm926, %v925, 0
        %v928 = vshrl.u32 %v927, 5
        %v929 = vand.u32 %v927, 31
        %v930 = vsub.s32 32, %v929
        %v931 = vshrl.u32 683565275, %v930
        %v932 = vshll.u32 683565275, %v929
        %v933 = vshrl.u32 2475754826, %v930
        %v934 = vor.u32 %v932, %v933
        %v935 = vshll.u32 2475754826, %v929
        %v936 = vshrl.u32 2131351028, %v930
        %v937 = vor.u32 %v935, %v936
        %v938 = vshll.u32 2131351028, %v929
        %v939 = vshrl.u32 2102212464, %v930
        %v940 = vor.u32 %v938, %v939
        %v941 = vshll.u32 2102212464, %v929
        %v942 = vshrl.u32 920167782, %v930
        %v943 = vor.u32 %v941, %v942
        %v944 = vshll.u32 920167782, %v929
        %v945 = vshrl.u32 1326507024, %v930
        %v946 = vor.u32 %v944, %v945
        %vm947 = vcmp.lt.s32.totalorder %v928, 1
        %vm948 = vcmp.lt.s32.totalorder %v928, 2
        %vm949 = vcmp.lt.s32.totalorder %v928, 3
        %vm950 = vcmp.lt.s32.totalorder %v928, 4
        %v951 = vsel %vm947, %v931, %v934
        %v952 = vsel %vm950, %v940, 2102212464
        %v953 = vsel %vm949, %v937, %v952
        %v954 = vsel %vm948, %v951, %v953
        %v955 = vsel %vm947, %v934, %v937
        %v956 = vsel %vm950, %v943, 920167782
        %v957 = vsel %vm949, %v940, %v956
        %v958 = vsel %vm948, %v955, %v957
        %v959 = vsel %vm947, %v937, %v940
        %v960 = vsel %vm950, %v946, 1326507024
        %v961 = vsel %vm949, %v943, %v960
        %v962 = vsel %vm948, %v959, %v961
        %v963 = vshll.u32 %v923, 8
        %v964 = vmul.u32.u64.compose %v963, %v962
        %v965 = vextract.low.u32 %v964
        %v966 = vextract.high.u32 %v964
        %v967 = vmul.u32.u64.compose %v963, %v958
        %v968 = vextract.low.u32 %v967
        %v969 = vextract.high.u32 %v967
        %v970 = vmul.u32 %v963, %v954
        %v971 = vadd.s32 %v966, %v968
        %vm972 = vc.u32 %v966, %v968
        %v973 = vadd.s32 %v969, 1
        %v974 = vsel %vm972, %v973, %v969
        %v975 = vadd.s32 %v970, %v974
        %v976 = vadd.s32 %v975, 536870912
        %v977 = vshrl.u32 %v976, 30
        %v978 = vshll.u32 %v977, 30
        %v979 = vsub.s32 %v975, %v978
        %vm980 = vcmp.lt.s32.totalorder %v979, 0
        %v981 = vsub.s32 0, %v979
        %v982 = vsel %vm980, %v981, %v979
        %v983 = vclz %v982
        %v984 = vsub.s32 %v983, 2
        %vm985 = vcmp.gt.s32.totalorder 0, %v984
        %v986 = vsel %vm985, 0, %v984
        %v987 = vsub.s32 32, %v986
        %v988 = vshll.u32 %v979, %v986
        %v989 = vshrl.u32 %v971, %v987
        %v990 = vor.u32 %v988, %v989
        %v991 = vsub.s32 4294967266, %v986
        %v992 = vadd.s32 %v991, 127
        %v993 = vshll.u32 %v992, 23
        %v994 = vor.u32 4788187, %v993
        %v995 = vand.u32 2147483647, %v994
        %v997 = vcvt.s32.f32 %v990
        %v998 = vmul.f32 %v997, %v995
        %v999 = vxor.u32 %v998, 2147483648
        %v1000 = vsel %vm917, %v999, %v998
        %v1001 = vsub.s32 4, %v977
        %v1002 = vsel %vm917, %v1001, %v977
        %v1003 = vsel %vm916, %v265, %v1000
        %v1004 = vsel %vm916, 0, %v1002
        %v1005 = vcosq.f32.pop %v1003
        %v1006 = vsinq.f32.pop %v1003
        %vm1007 = vweird.f32 %v265
        %v1008 = vadd.s32 %v1004, 3
        %v1009 = vand.u32 %v1008, 3
        %vm1010 = vcmp.lt.s32.totalorder %v1009, 2
        %vm1011 = vcmp.eq.s32.totalorder %v1009, 0
        %v1012 = vxor.u32 %v1006, 2147483648
        %v1013 = vsel %vm1011, %v1005, %v1012
        %vm1014 = vcmp.eq.s32.totalorder %v1009, 2
        %v1015 = vxor.u32 %v1005, 2147483648
        %v1016 = vsel %vm1014, %v1015, %v1006
        %v1017 = vsel %vm1010, %v1013, %v1016
        %v1018 = vsel %vm1007, nan, %v1017
        %v1019 = vand.u32 2147483647, %v266
        %vm1020 = vcmp.le.f32.partialorder %v1019, 0.7853982
        %vm1021 = vcmp.lt.s32.totalorder %v266, 0
        %v1022 = vand.u32 %v266, 2139095040
        %v1023 = vshrl.u32 %v1022, 23
        %v1024 = vsub.s32 %v1023, 127
        %v1025 = vand.u32 2147483647, %v266
        %v1026 = vand.u32 %v1025, 8388607
        %v1027 = vor.u32 %v1026, 8388608
        %v1028 = vsub.s32 0, %v1027
        %v1029 = vadd.s32 %v1024, 1
        %vm1030 = vcmp.gt.s32.totalorder %v1029, 0
        %v1031 = vsel %vm1030, %v1029, 0
        %v1032 = vshrl.u32 %v1031, 5
        %v1033 = vand.u32 %v1031, 31
        %v1034 = vsub.s32 32, %v1033
        %v1035 = vshrl.u32 683565275, %v1034
        %v1036 = vshll.u32 683565275, %v1033
        %v1037 = vshrl.u32 2475754826, %v1034
        %v1038 = vor.u32 %v1036, %v1037
        %v1039 = vshll.u32 2475754826, %v1033
        %v1040 = vshrl.u32 2131351028, %v1034
        %v1041 = vor.u32 %v1039, %v1040
        %v1042 = vshll.u32 2131351028, %v1033
        %v1043 = vshrl.u32 2102212464, %v1034
        %v1044 = vor.u32 %v1042, %v1043
        %v1045 = vshll.u32 2102212464, %v1033
        %v1046 = vshrl.u32 920167782, %v1034
        %v1047 = vor.u32 %v1045, %v1046
        %v1048 = vshll.u32 920167782, %v1033
        %v1049 = vshrl.u32 1326507024, %v1034
        %v1050 = vor.u32 %v1048, %v1049
        %vm1051 = vcmp.lt.s32.totalorder %v1032, 1
        %vm1052 = vcmp.lt.s32.totalorder %v1032, 2
        %vm1053 = vcmp.lt.s32.totalorder %v1032, 3
        %vm1054 = vcmp.lt.s32.totalorder %v1032, 4
        %v1055 = vsel %vm1051, %v1035, %v1038
        %v1056 = vsel %vm1054, %v1044, 2102212464
        %v1057 = vsel %vm1053, %v1041, %v1056
        %v1058 = vsel %vm1052, %v1055, %v1057
        %v1059 = vsel %vm1051, %v1038, %v1041
        %v1060 = vsel %vm1054, %v1047, 920167782
        %v1061 = vsel %vm1053, %v1044, %v1060
        %v1062 = vsel %vm1052, %v1059, %v1061
        %v1063 = vsel %vm1051, %v1041, %v1044
        %v1064 = vsel %vm1054, %v1050, 1326507024
        %v1065 = vsel %vm1053, %v1047, %v1064
        %v1066 = vsel %vm1052, %v1063, %v1065
        %v1067 = vshll.u32 %v1027, 8
        %v1068 = vmul.u32.u64.compose %v1067, %v1066
        %v1069 = vextract.low.u32 %v1068
        %v1070 = vextract.high.u32 %v1068
        %v1071 = vmul.u32.u64.compose %v1067, %v1062
        %v1072 = vextract.low.u32 %v1071
        %v1073 = vextract.high.u32 %v1071
        %v1074 = vmul.u32 %v1067, %v1058
        %v1075 = vadd.s32 %v1070, %v1072
        %vm1076 = vc.u32 %v1070, %v1072
        %v1077 = vadd.s32 %v1073, 1
        %v1078 = vsel %vm1076, %v1077, %v1073
        %v1079 = vadd.s32 %v1074, %v1078
        %v1080 = vadd.s32 %v1079, 536870912
        %v1081 = vshrl.u32 %v1080, 30
        %v1082 = vshll.u32 %v1081, 30
        %v1083 = vsub.s32 %v1079, %v1082
        %vm1084 = vcmp.lt.s32.totalorder %v1083, 0
        %v1085 = vsub.s32 0, %v1083
        %v1086 = vsel %vm1084, %v1085, %v1083
        %v1087 = vclz %v1086
        %v1088 = vsub.s32 %v1087, 2
        %vm1089 = vcmp.gt.s32.totalorder 0, %v1088
        %v1090 = vsel %vm1089, 0, %v1088
        %v1091 = vsub.s32 32, %v1090
        %v1092 = vshll.u32 %v1083, %v1090
        %v1093 = vshrl.u32 %v1075, %v1091
        %v1094 = vor.u32 %v1092, %v1093
        %v1095 = vsub.s32 4294967266, %v1090
        %v1096 = vadd.s32 %v1095, 127
        %v1097 = vshll.u32 %v1096, 23
        %v1098 = vor.u32 4788187, %v1097
        %v1099 = vand.u32 2147483647, %v1098
        %v1101 = vcvt.s32.f32 %v1094
        %v1102 = vmul.f32 %v1101, %v1099
        %v1103 = vxor.u32 %v1102, 2147483648
        %v1104 = vsel %vm1021, %v1103, %v1102
        %v1105 = vsub.s32 4, %v1081
        %v1106 = vsel %vm1021, %v1105, %v1081
        %v1107 = vsel %vm1020, %v266, %v1104
        %v1108 = vsel %vm1020, 0, %v1106
        %v1109 = vcosq.f32.pop %v1107
        %v1110 = vsinq.f32.pop %v1107
        %vm1111 = vweird.f32 %v266
        %v1112 = vadd.s32 %v1108, 3
        %v1113 = vand.u32 %v1112, 3
        %vm1114 = vcmp.lt.s32.totalorder %v1113, 2
        %vm1115 = vcmp.eq.s32.totalorder %v1113, 0
        %v1116 = vxor.u32 %v1110, 2147483648
        %v1117 = vsel %vm1115, %v1109, %v1116
        %vm1118 = vcmp.eq.s32.totalorder %v1113, 2
        %v1119 = vxor.u32 %v1109, 2147483648
        %v1120 = vsel %vm1118, %v1119, %v1110
        %v1121 = vsel %vm1114, %v1117, %v1120
        %v1122 = vsel %vm1111, nan, %v1121
        %v1123 = vand.u32 2147483647, %v267
        %vm1124 = vcmp.le.f32.partialorder %v1123, 0.7853982
        %vm1125 = vcmp.lt.s32.totalorder %v267, 0
        %v1126 = vand.u32 %v267, 2139095040
        %v1127 = vshrl.u32 %v1126, 23
        %v1128 = vsub.s32 %v1127, 127
        %v1129 = vand.u32 2147483647, %v267
        %v1130 = vand.u32 %v1129, 8388607
        %v1131 = vor.u32 %v1130, 8388608
        %v1132 = vsub.s32 0, %v1131
        %v1133 = vadd.s32 %v1128, 1
        %vm1134 = vcmp.gt.s32.totalorder %v1133, 0
        %v1135 = vsel %vm1134, %v1133, 0
        %v1136 = vshrl.u32 %v1135, 5
        %v1137 = vand.u32 %v1135, 31
        %v1138 = vsub.s32 32, %v1137
        %v1139 = vshrl.u32 683565275, %v1138
        %v1140 = vshll.u32 683565275, %v1137
        %v1141 = vshrl.u32 2475754826, %v1138
        %v1142 = vor.u32 %v1140, %v1141
        %v1143 = vshll.u32 2475754826, %v1137
        %v1144 = vshrl.u32 2131351028, %v1138
        %v1145 = vor.u32 %v1143, %v1144
        %v1146 = vshll.u32 2131351028, %v1137
        %v1147 = vshrl.u32 2102212464, %v1138
        %v1148 = vor.u32 %v1146, %v1147
        %v1149 = vshll.u32 2102212464, %v1137
        %v1150 = vshrl.u32 920167782, %v1138
        %v1151 = vor.u32 %v1149, %v1150
        %v1152 = vshll.u32 920167782, %v1137
        %v1153 = vshrl.u32 1326507024, %v1138
        %v1154 = vor.u32 %v1152, %v1153
        %vm1155 = vcmp.lt.s32.totalorder %v1136, 1
        %vm1156 = vcmp.lt.s32.totalorder %v1136, 2
        %vm1157 = vcmp.lt.s32.totalorder %v1136, 3
        %vm1158 = vcmp.lt.s32.totalorder %v1136, 4
        %v1159 = vsel %vm1155, %v1139, %v1142
        %v1160 = vsel %vm1158, %v1148, 2102212464
        %v1161 = vsel %vm1157, %v1145, %v1160
        %v1162 = vsel %vm1156, %v1159, %v1161
        %v1163 = vsel %vm1155, %v1142, %v1145
        %v1164 = vsel %vm1158, %v1151, 920167782
        %v1165 = vsel %vm1157, %v1148, %v1164
        %v1166 = vsel %vm1156, %v1163, %v1165
        %v1167 = vsel %vm1155, %v1145, %v1148
        %v1168 = vsel %vm1158, %v1154, 1326507024
        %v1169 = vsel %vm1157, %v1151, %v1168
        %v1170 = vsel %vm1156, %v1167, %v1169
        %v1171 = vshll.u32 %v1131, 8
        %v1172 = vmul.u32.u64.compose %v1171, %v1170
        %v1173 = vextract.low.u32 %v1172
        %v1174 = vextract.high.u32 %v1172
        %v1175 = vmul.u32.u64.compose %v1171, %v1166
        %v1176 = vextract.low.u32 %v1175
        %v1177 = vextract.high.u32 %v1175
        %v1178 = vmul.u32 %v1171, %v1162
        %v1179 = vadd.s32 %v1174, %v1176
        %vm1180 = vc.u32 %v1174, %v1176
        %v1181 = vadd.s32 %v1177, 1
        %v1182 = vsel %vm1180, %v1181, %v1177
        %v1183 = vadd.s32 %v1178, %v1182
        %v1184 = vadd.s32 %v1183, 536870912
        %v1185 = vshrl.u32 %v1184, 30
        %v1186 = vshll.u32 %v1185, 30
        %v1187 = vsub.s32 %v1183, %v1186
        %vm1188 = vcmp.lt.s32.totalorder %v1187, 0
        %v1189 = vsub.s32 0, %v1187
        %v1190 = vsel %vm1188, %v1189, %v1187
        %v1191 = vclz %v1190
        %v1192 = vsub.s32 %v1191, 2
        %vm1193 = vcmp.gt.s32.totalorder 0, %v1192
        %v1194 = vsel %vm1193, 0, %v1192
        %v1195 = vsub.s32 32, %v1194
        %v1196 = vshll.u32 %v1187, %v1194
        %v1197 = vshrl.u32 %v1179, %v1195
        %v1198 = vor.u32 %v1196, %v1197
        %v1199 = vsub.s32 4294967266, %v1194
        %v1200 = vadd.s32 %v1199, 127
        %v1201 = vshll.u32 %v1200, 23
        %v1202 = vor.u32 4788187, %v1201
        %v1203 = vand.u32 2147483647, %v1202
        %v1205 = vcvt.s32.f32 %v1198
        %v1206 = vmul.f32 %v1205, %v1203
        %v1207 = vxor.u32 %v1206, 2147483648
        %v1208 = vsel %vm1125, %v1207, %v1206
        %v1209 = vsub.s32 4, %v1185
        %v1210 = vsel %vm1125, %v1209, %v1185
        %v1211 = vsel %vm1124, %v267, %v1208
        %v1212 = vsel %vm1124, 0, %v1210
        %v1213 = vcosq.f32.pop %v1211
        %v1214 = vsinq.f32.pop %v1211
        %vm1215 = vweird.f32 %v267
        %v1216 = vadd.s32 %v1212, 3
        %v1217 = vand.u32 %v1216, 3
        %vm1218 = vcmp.lt.s32.totalorder %v1217, 2
        %vm1219 = vcmp.eq.s32.totalorder %v1217, 0
        %v1220 = vxor.u32 %v1214, 2147483648
        %v1221 = vsel %vm1219, %v1213, %v1220
        %vm1222 = vcmp.eq.s32.totalorder %v1217, 2
        %v1223 = vxor.u32 %v1213, 2147483648
        %v1224 = vsel %vm1222, %v1223, %v1214
        %v1225 = vsel %vm1218, %v1221, %v1224
        %v1226 = vsel %vm1215, nan, %v1225
        %v1227 = vand.u32 2147483647, %v268
        %vm1228 = vcmp.le.f32.partialorder %v1227, 0.7853982
        %vm1229 = vcmp.lt.s32.totalorder %v268, 0
        %v1230 = vand.u32 %v268, 2139095040
        %v1231 = vshrl.u32 %v1230, 23
        %v1232 = vsub.s32 %v1231, 127
        %v1233 = vand.u32 2147483647, %v268
        %v1234 = vand.u32 %v1233, 8388607
        %v1235 = vor.u32 %v1234, 8388608
        %v1236 = vsub.s32 0, %v1235
        %v1237 = vadd.s32 %v1232, 1
        %vm1238 = vcmp.gt.s32.totalorder %v1237, 0
        %v1239 = vsel %vm1238, %v1237, 0
        %v1240 = vshrl.u32 %v1239, 5
        %v1241 = vand.u32 %v1239, 31
        %v1242 = vsub.s32 32, %v1241
        %v1243 = vshrl.u32 683565275, %v1242
        %v1244 = vshll.u32 683565275, %v1241
        %v1245 = vshrl.u32 2475754826, %v1242
        %v1246 = vor.u32 %v1244, %v1245
        %v1247 = vshll.u32 2475754826, %v1241
        %v1248 = vshrl.u32 2131351028, %v1242
        %v1249 = vor.u32 %v1247, %v1248
        %v1250 = vshll.u32 2131351028, %v1241
        %v1251 = vshrl.u32 2102212464, %v1242
        %v1252 = vor.u32 %v1250, %v1251
        %v1253 = vshll.u32 2102212464, %v1241
        %v1254 = vshrl.u32 920167782, %v1242
        %v1255 = vor.u32 %v1253, %v1254
        %v1256 = vshll.u32 920167782, %v1241
        %v1257 = vshrl.u32 1326507024, %v1242
        %v1258 = vor.u32 %v1256, %v1257
        %vm1259 = vcmp.lt.s32.totalorder %v1240, 1
        %vm1260 = vcmp.lt.s32.totalorder %v1240, 2
        %vm1261 = vcmp.lt.s32.totalorder %v1240, 3
        %vm1262 = vcmp.lt.s32.totalorder %v1240, 4
        %v1263 = vsel %vm1259, %v1243, %v1246
        %v1264 = vsel %vm1262, %v1252, 2102212464
        %v1265 = vsel %vm1261, %v1249, %v1264
        %v1266 = vsel %vm1260, %v1263, %v1265
        %v1267 = vsel %vm1259, %v1246, %v1249
        %v1268 = vsel %vm1262, %v1255, 920167782
        %v1269 = vsel %vm1261, %v1252, %v1268
        %v1270 = vsel %vm1260, %v1267, %v1269
        %v1271 = vsel %vm1259, %v1249, %v1252
        %v1272 = vsel %vm1262, %v1258, 1326507024
        %v1273 = vsel %vm1261, %v1255, %v1272
        %v1274 = vsel %vm1260, %v1271, %v1273
        %v1275 = vshll.u32 %v1235, 8
        %v1276 = vmul.u32.u64.compose %v1275, %v1274
        %v1277 = vextract.low.u32 %v1276
        %v1278 = vextract.high.u32 %v1276
        %v1279 = vmul.u32.u64.compose %v1275, %v1270
        %v1280 = vextract.low.u32 %v1279
        %v1281 = vextract.high.u32 %v1279
        %v1282 = vmul.u32 %v1275, %v1266
        %v1283 = vadd.s32 %v1278, %v1280
        %vm1284 = vc.u32 %v1278, %v1280
        %v1285 = vadd.s32 %v1281, 1
        %v1286 = vsel %vm1284, %v1285, %v1281
        %v1287 = vadd.s32 %v1282, %v1286
        %v1288 = vadd.s32 %v1287, 536870912
        %v1289 = vshrl.u32 %v1288, 30
        %v1290 = vshll.u32 %v1289, 30
        %v1291 = vsub.s32 %v1287, %v1290
        %vm1292 = vcmp.lt.s32.totalorder %v1291, 0
        %v1293 = vsub.s32 0, %v1291
        %v1294 = vsel %vm1292, %v1293, %v1291
        %v1295 = vclz %v1294
        %v1296 = vsub.s32 %v1295, 2
        %vm1297 = vcmp.gt.s32.totalorder 0, %v1296
        %v1298 = vsel %vm1297, 0, %v1296
        %v1299 = vsub.s32 32, %v1298
        %v1300 = vshll.u32 %v1291, %v1298
        %v1301 = vshrl.u32 %v1283, %v1299
        %v1302 = vor.u32 %v1300, %v1301
        %v1303 = vsub.s32 4294967266, %v1298
        %v1304 = vadd.s32 %v1303, 127
        %v1305 = vshll.u32 %v1304, 23
        %v1306 = vor.u32 4788187, %v1305
        %v1307 = vand.u32 2147483647, %v1306
        %v1309 = vcvt.s32.f32 %v1302
        %v1310 = vmul.f32 %v1309, %v1307
        %v1311 = vxor.u32 %v1310, 2147483648
        %v1312 = vsel %vm1229, %v1311, %v1310
        %v1313 = vsub.s32 4, %v1289
        %v1314 = vsel %vm1229, %v1313, %v1289
        %v1315 = vsel %vm1228, %v268, %v1312
        %v1316 = vsel %vm1228, 0, %v1314
        %v1317 = vcosq.f32.pop %v1315
        %v1318 = vsinq.f32.pop %v1315
        %vm1319 = vweird.f32 %v268
        %v1320 = vadd.s32 %v1316, 3
        %v1321 = vand.u32 %v1320, 3
        %vm1322 = vcmp.lt.s32.totalorder %v1321, 2
        %vm1323 = vcmp.eq.s32.totalorder %v1321, 0
        %v1324 = vxor.u32 %v1318, 2147483648
        %v1325 = vsel %vm1323, %v1317, %v1324
        %vm1326 = vcmp.eq.s32.totalorder %v1321, 2
        %v1327 = vxor.u32 %v1317, 2147483648
        %v1328 = vsel %vm1326, %v1327, %v1318
        %v1329 = vsel %vm1322, %v1325, %v1328
        %v1330 = vsel %vm1319, nan, %v1329
        %v1331 = vand.u32 2147483647, %v269
        %vm1332 = vcmp.le.f32.partialorder %v1331, 0.7853982
        %vm1333 = vcmp.lt.s32.totalorder %v269, 0
        %v1334 = vand.u32 %v269, 2139095040
        %v1335 = vshrl.u32 %v1334, 23
        %v1336 = vsub.s32 %v1335, 127
        %v1337 = vand.u32 2147483647, %v269
        %v1338 = vand.u32 %v1337, 8388607
        %v1339 = vor.u32 %v1338, 8388608
        %v1340 = vsub.s32 0, %v1339
        %v1341 = vadd.s32 %v1336, 1
        %vm1342 = vcmp.gt.s32.totalorder %v1341, 0
        %v1343 = vsel %vm1342, %v1341, 0
        %v1344 = vshrl.u32 %v1343, 5
        %v1345 = vand.u32 %v1343, 31
        %v1346 = vsub.s32 32, %v1345
        %v1347 = vshrl.u32 683565275, %v1346
        %v1348 = vshll.u32 683565275, %v1345
        %v1349 = vshrl.u32 2475754826, %v1346
        %v1350 = vor.u32 %v1348, %v1349
        %v1351 = vshll.u32 2475754826, %v1345
        %v1352 = vshrl.u32 2131351028, %v1346
        %v1353 = vor.u32 %v1351, %v1352
        %v1354 = vshll.u32 2131351028, %v1345
        %v1355 = vshrl.u32 2102212464, %v1346
        %v1356 = vor.u32 %v1354, %v1355
        %v1357 = vshll.u32 2102212464, %v1345
        %v1358 = vshrl.u32 920167782, %v1346
        %v1359 = vor.u32 %v1357, %v1358
        %v1360 = vshll.u32 920167782, %v1345
        %v1361 = vshrl.u32 1326507024, %v1346
        %v1362 = vor.u32 %v1360, %v1361
        %vm1363 = vcmp.lt.s32.totalorder %v1344, 1
        %vm1364 = vcmp.lt.s32.totalorder %v1344, 2
        %vm1365 = vcmp.lt.s32.totalorder %v1344, 3
        %vm1366 = vcmp.lt.s32.totalorder %v1344, 4
        %v1367 = vsel %vm1363, %v1347, %v1350
        %v1368 = vsel %vm1366, %v1356, 2102212464
        %v1369 = vsel %vm1365, %v1353, %v1368
        %v1370 = vsel %vm1364, %v1367, %v1369
        %v1371 = vsel %vm1363, %v1350, %v1353
        %v1372 = vsel %vm1366, %v1359, 920167782
        %v1373 = vsel %vm1365, %v1356, %v1372
        %v1374 = vsel %vm1364, %v1371, %v1373
        %v1375 = vsel %vm1363, %v1353, %v1356
        %v1376 = vsel %vm1366, %v1362, 1326507024
        %v1377 = vsel %vm1365, %v1359, %v1376
        %v1378 = vsel %vm1364, %v1375, %v1377
        %v1379 = vshll.u32 %v1339, 8
        %v1380 = vmul.u32.u64.compose %v1379, %v1378
        %v1381 = vextract.low.u32 %v1380
        %v1382 = vextract.high.u32 %v1380
        %v1383 = vmul.u32.u64.compose %v1379, %v1374
        %v1384 = vextract.low.u32 %v1383
        %v1385 = vextract.high.u32 %v1383
        %v1386 = vmul.u32 %v1379, %v1370
        %v1387 = vadd.s32 %v1382, %v1384
        %vm1388 = vc.u32 %v1382, %v1384
        %v1389 = vadd.s32 %v1385, 1
        %v1390 = vsel %vm1388, %v1389, %v1385
        %v1391 = vadd.s32 %v1386, %v1390
        %v1392 = vadd.s32 %v1391, 536870912
        %v1393 = vshrl.u32 %v1392, 30
        %v1394 = vshll.u32 %v1393, 30
        %v1395 = vsub.s32 %v1391, %v1394
        %vm1396 = vcmp.lt.s32.totalorder %v1395, 0
        %v1397 = vsub.s32 0, %v1395
        %v1398 = vsel %vm1396, %v1397, %v1395
        %v1399 = vclz %v1398
        %v1400 = vsub.s32 %v1399, 2
        %vm1401 = vcmp.gt.s32.totalorder 0, %v1400
        %v1402 = vsel %vm1401, 0, %v1400
        %v1403 = vsub.s32 32, %v1402
        %v1404 = vshll.u32 %v1395, %v1402
        %v1405 = vshrl.u32 %v1387, %v1403
        %v1406 = vor.u32 %v1404, %v1405
        %v1407 = vsub.s32 4294967266, %v1402
        %v1408 = vadd.s32 %v1407, 127
        %v1409 = vshll.u32 %v1408, 23
        %v1410 = vor.u32 4788187, %v1409
        %v1411 = vand.u32 2147483647, %v1410
        %v1413 = vcvt.s32.f32 %v1406
        %v1414 = vmul.f32 %v1413, %v1411
        %v1415 = vxor.u32 %v1414, 2147483648
        %v1416 = vsel %vm1333, %v1415, %v1414
        %v1417 = vsub.s32 4, %v1393
        %v1418 = vsel %vm1333, %v1417, %v1393
        %v1419 = vsel %vm1332, %v269, %v1416
        %v1420 = vsel %vm1332, 0, %v1418
        %v1421 = vcosq.f32.pop %v1419
        %v1422 = vsinq.f32.pop %v1419
        %vm1423 = vweird.f32 %v269
        %v1424 = vadd.s32 %v1420, 3
        %v1425 = vand.u32 %v1424, 3
        %vm1426 = vcmp.lt.s32.totalorder %v1425, 2
        %vm1427 = vcmp.eq.s32.totalorder %v1425, 0
        %v1428 = vxor.u32 %v1422, 2147483648
        %v1429 = vsel %vm1427, %v1421, %v1428
        %vm1430 = vcmp.eq.s32.totalorder %v1425, 2
        %v1431 = vxor.u32 %v1421, 2147483648
        %v1432 = vsel %vm1430, %v1431, %v1422
        %v1433 = vsel %vm1426, %v1429, %v1432
        %v1434 = vsel %vm1423, nan, %v1433
        %v1435 = vand.u32 2147483647, %v270
        %vm1436 = vcmp.le.f32.partialorder %v1435, 0.7853982
        %vm1437 = vcmp.lt.s32.totalorder %v270, 0
        %v1438 = vand.u32 %v270, 2139095040
        %v1439 = vshrl.u32 %v1438, 23
        %v1440 = vsub.s32 %v1439, 127
        %v1441 = vand.u32 2147483647, %v270
        %v1442 = vand.u32 %v1441, 8388607
        %v1443 = vor.u32 %v1442, 8388608
        %v1444 = vsub.s32 0, %v1443
        %v1445 = vadd.s32 %v1440, 1
        %vm1446 = vcmp.gt.s32.totalorder %v1445, 0
        %v1447 = vsel %vm1446, %v1445, 0
        %v1448 = vshrl.u32 %v1447, 5
        %v1449 = vand.u32 %v1447, 31
        %v1450 = vsub.s32 32, %v1449
        %v1451 = vshrl.u32 683565275, %v1450
        %v1452 = vshll.u32 683565275, %v1449
        %v1453 = vshrl.u32 2475754826, %v1450
        %v1454 = vor.u32 %v1452, %v1453
        %v1455 = vshll.u32 2475754826, %v1449
        %v1456 = vshrl.u32 2131351028, %v1450
        %v1457 = vor.u32 %v1455, %v1456
        %v1458 = vshll.u32 2131351028, %v1449
        %v1459 = vshrl.u32 2102212464, %v1450
        %v1460 = vor.u32 %v1458, %v1459
        %v1461 = vshll.u32 2102212464, %v1449
        %v1462 = vshrl.u32 920167782, %v1450
        %v1463 = vor.u32 %v1461, %v1462
        %v1464 = vshll.u32 920167782, %v1449
        %v1465 = vshrl.u32 1326507024, %v1450
        %v1466 = vor.u32 %v1464, %v1465
        %vm1467 = vcmp.lt.s32.totalorder %v1448, 1
        %vm1468 = vcmp.lt.s32.totalorder %v1448, 2
        %vm1469 = vcmp.lt.s32.totalorder %v1448, 3
        %vm1470 = vcmp.lt.s32.totalorder %v1448, 4
        %v1471 = vsel %vm1467, %v1451, %v1454
        %v1472 = vsel %vm1470, %v1460, 2102212464
        %v1473 = vsel %vm1469, %v1457, %v1472
        %v1474 = vsel %vm1468, %v1471, %v1473
        %v1475 = vsel %vm1467, %v1454, %v1457
        %v1476 = vsel %vm1470, %v1463, 920167782
        %v1477 = vsel %vm1469, %v1460, %v1476
        %v1478 = vsel %vm1468, %v1475, %v1477
        %v1479 = vsel %vm1467, %v1457, %v1460
        %v1480 = vsel %vm1470, %v1466, 1326507024
        %v1481 = vsel %vm1469, %v1463, %v1480
        %v1482 = vsel %vm1468, %v1479, %v1481
        %v1483 = vshll.u32 %v1443, 8
        %v1484 = vmul.u32.u64.compose %v1483, %v1482
        %v1485 = vextract.low.u32 %v1484
        %v1486 = vextract.high.u32 %v1484
        %v1487 = vmul.u32.u64.compose %v1483, %v1478
        %v1488 = vextract.low.u32 %v1487
        %v1489 = vextract.high.u32 %v1487
        %v1490 = vmul.u32 %v1483, %v1474
        %v1491 = vadd.s32 %v1486, %v1488
        %vm1492 = vc.u32 %v1486, %v1488
        %v1493 = vadd.s32 %v1489, 1
        %v1494 = vsel %vm1492, %v1493, %v1489
        %v1495 = vadd.s32 %v1490, %v1494
        %v1496 = vadd.s32 %v1495, 536870912
        %v1497 = vshrl.u32 %v1496, 30
        %v1498 = vshll.u32 %v1497, 30
        %v1499 = vsub.s32 %v1495, %v1498
        %vm1500 = vcmp.lt.s32.totalorder %v1499, 0
        %v1501 = vsub.s32 0, %v1499
        %v1502 = vsel %vm1500, %v1501, %v1499
        %v1503 = vclz %v1502
        %v1504 = vsub.s32 %v1503, 2
        %vm1505 = vcmp.gt.s32.totalorder 0, %v1504
        %v1506 = vsel %vm1505, 0, %v1504
        %v1507 = vsub.s32 32, %v1506
        %v1508 = vshll.u32 %v1499, %v1506
        %v1509 = vshrl.u32 %v1491, %v1507
        %v1510 = vor.u32 %v1508, %v1509
        %v1511 = vsub.s32 4294967266, %v1506
        %v1512 = vadd.s32 %v1511, 127
        %v1513 = vshll.u32 %v1512, 23
        %v1514 = vor.u32 4788187, %v1513
        %v1515 = vand.u32 2147483647, %v1514
        %v1517 = vcvt.s32.f32 %v1510
        %v1518 = vmul.f32 %v1517, %v1515
        %v1519 = vxor.u32 %v1518, 2147483648
        %v1520 = vsel %vm1437, %v1519, %v1518
        %v1521 = vsub.s32 4, %v1497
        %v1522 = vsel %vm1437, %v1521, %v1497
        %v1523 = vsel %vm1436, %v270, %v1520
        %v1524 = vsel %vm1436, 0, %v1522
        %v1525 = vcosq.f32.pop %v1523
        %v1526 = vsinq.f32.pop %v1523
        %vm1527 = vweird.f32 %v270
        %v1528 = vadd.s32 %v1524, 3
        %v1529 = vand.u32 %v1528, 3
        %vm1530 = vcmp.lt.s32.totalorder %v1529, 2
        %vm1531 = vcmp.eq.s32.totalorder %v1529, 0
        %v1532 = vxor.u32 %v1526, 2147483648
        %v1533 = vsel %vm1531, %v1525, %v1532
        %vm1534 = vcmp.eq.s32.totalorder %v1529, 2
        %v1535 = vxor.u32 %v1525, 2147483648
        %v1536 = vsel %vm1534, %v1535, %v1526
        %v1537 = vsel %vm1530, %v1533, %v1536
        %v1538 = vsel %vm1527, nan, %v1537
        %v1539 = vand.u32 2147483647, %v271
        %vm1540 = vcmp.le.f32.partialorder %v1539, 0.7853982
        %vm1541 = vcmp.lt.s32.totalorder %v271, 0
        %v1542 = vand.u32 %v271, 2139095040
        %v1543 = vshrl.u32 %v1542, 23
        %v1544 = vsub.s32 %v1543, 127
        %v1545 = vand.u32 2147483647, %v271
        %v1546 = vand.u32 %v1545, 8388607
        %v1547 = vor.u32 %v1546, 8388608
        %v1548 = vsub.s32 0, %v1547
        %v1549 = vadd.s32 %v1544, 1
        %vm1550 = vcmp.gt.s32.totalorder %v1549, 0
        %v1551 = vsel %vm1550, %v1549, 0
        %v1552 = vshrl.u32 %v1551, 5
        %v1553 = vand.u32 %v1551, 31
        %v1554 = vsub.s32 32, %v1553
        %v1555 = vshrl.u32 683565275, %v1554
        %v1556 = vshll.u32 683565275, %v1553
        %v1557 = vshrl.u32 2475754826, %v1554
        %v1558 = vor.u32 %v1556, %v1557
        %v1559 = vshll.u32 2475754826, %v1553
        %v1560 = vshrl.u32 2131351028, %v1554
        %v1561 = vor.u32 %v1559, %v1560
        %v1562 = vshll.u32 2131351028, %v1553
        %v1563 = vshrl.u32 2102212464, %v1554
        %v1564 = vor.u32 %v1562, %v1563
        %v1565 = vshll.u32 2102212464, %v1553
        %v1566 = vshrl.u32 920167782, %v1554
        %v1567 = vor.u32 %v1565, %v1566
        %v1568 = vshll.u32 920167782, %v1553
        %v1569 = vshrl.u32 1326507024, %v1554
        %v1570 = vor.u32 %v1568, %v1569
        %vm1571 = vcmp.lt.s32.totalorder %v1552, 1
        %vm1572 = vcmp.lt.s32.totalorder %v1552, 2
        %vm1573 = vcmp.lt.s32.totalorder %v1552, 3
        %vm1574 = vcmp.lt.s32.totalorder %v1552, 4
        %v1575 = vsel %vm1571, %v1555, %v1558
        %v1576 = vsel %vm1574, %v1564, 2102212464
        %v1577 = vsel %vm1573, %v1561, %v1576
        %v1578 = vsel %vm1572, %v1575, %v1577
        %v1579 = vsel %vm1571, %v1558, %v1561
        %v1580 = vsel %vm1574, %v1567, 920167782
        %v1581 = vsel %vm1573, %v1564, %v1580
        %v1582 = vsel %vm1572, %v1579, %v1581
        %v1583 = vsel %vm1571, %v1561, %v1564
        %v1584 = vsel %vm1574, %v1570, 1326507024
        %v1585 = vsel %vm1573, %v1567, %v1584
        %v1586 = vsel %vm1572, %v1583, %v1585
        %v1587 = vshll.u32 %v1547, 8
        %v1588 = vmul.u32.u64.compose %v1587, %v1586
        %v1589 = vextract.low.u32 %v1588
        %v1590 = vextract.high.u32 %v1588
        %v1591 = vmul.u32.u64.compose %v1587, %v1582
        %v1592 = vextract.low.u32 %v1591
        %v1593 = vextract.high.u32 %v1591
        %v1594 = vmul.u32 %v1587, %v1578
        %v1595 = vadd.s32 %v1590, %v1592
        %vm1596 = vc.u32 %v1590, %v1592
        %v1597 = vadd.s32 %v1593, 1
        %v1598 = vsel %vm1596, %v1597, %v1593
        %v1599 = vadd.s32 %v1594, %v1598
        %v1600 = vadd.s32 %v1599, 536870912
        %v1601 = vshrl.u32 %v1600, 30
        %v1602 = vshll.u32 %v1601, 30
        %v1603 = vsub.s32 %v1599, %v1602
        %vm1604 = vcmp.lt.s32.totalorder %v1603, 0
        %v1605 = vsub.s32 0, %v1603
        %v1606 = vsel %vm1604, %v1605, %v1603
        %v1607 = vclz %v1606
        %v1608 = vsub.s32 %v1607, 2
        %vm1609 = vcmp.gt.s32.totalorder 0, %v1608
        %v1610 = vsel %vm1609, 0, %v1608
        %v1611 = vsub.s32 32, %v1610
        %v1612 = vshll.u32 %v1603, %v1610
        %v1613 = vshrl.u32 %v1595, %v1611
        %v1614 = vor.u32 %v1612, %v1613
        %v1615 = vsub.s32 4294967266, %v1610
        %v1616 = vadd.s32 %v1615, 127
        %v1617 = vshll.u32 %v1616, 23
        %v1618 = vor.u32 4788187, %v1617
        %v1619 = vand.u32 2147483647, %v1618
        %v1621 = vcvt.s32.f32 %v1614
        %v1622 = vmul.f32 %v1621, %v1619
        %v1623 = vxor.u32 %v1622, 2147483648
        %v1624 = vsel %vm1541, %v1623, %v1622
        %v1625 = vsub.s32 4, %v1601
        %v1626 = vsel %vm1541, %v1625, %v1601
        %v1627 = vsel %vm1540, %v271, %v1624
        %v1628 = vsel %vm1540, 0, %v1626
        %v1629 = vcosq.f32.pop %v1627
        %v1630 = vsinq.f32.pop %v1627
        %vm1631 = vweird.f32 %v271
        %v1632 = vadd.s32 %v1628, 3
        %v1633 = vand.u32 %v1632, 3
        %vm1634 = vcmp.lt.s32.totalorder %v1633, 2
        %vm1635 = vcmp.eq.s32.totalorder %v1633, 0
        %v1636 = vxor.u32 %v1630, 2147483648
        %v1637 = vsel %vm1635, %v1629, %v1636
        %vm1638 = vcmp.eq.s32.totalorder %v1633, 2
        %v1639 = vxor.u32 %v1629, 2147483648
        %v1640 = vsel %vm1638, %v1639, %v1630
        %v1641 = vsel %vm1634, %v1637, %v1640
        %v1642 = vsel %vm1631, nan, %v1641
        %v1643 = vand.u32 2147483647, %v272
        %vm1644 = vcmp.le.f32.partialorder %v1643, 0.7853982
        %vm1645 = vcmp.lt.s32.totalorder %v272, 0
        %v1646 = vand.u32 %v272, 2139095040
        %v1647 = vshrl.u32 %v1646, 23
        %v1648 = vsub.s32 %v1647, 127
        %v1649 = vand.u32 2147483647, %v272
        %v1650 = vand.u32 %v1649, 8388607
        %v1651 = vor.u32 %v1650, 8388608
        %v1652 = vsub.s32 0, %v1651
        %v1653 = vadd.s32 %v1648, 1
        %vm1654 = vcmp.gt.s32.totalorder %v1653, 0
        %v1655 = vsel %vm1654, %v1653, 0
        %v1656 = vshrl.u32 %v1655, 5
        %v1657 = vand.u32 %v1655, 31
        %v1658 = vsub.s32 32, %v1657
        %v1659 = vshrl.u32 683565275, %v1658
        %v1660 = vshll.u32 683565275, %v1657
        %v1661 = vshrl.u32 2475754826, %v1658
        %v1662 = vor.u32 %v1660, %v1661
        %v1663 = vshll.u32 2475754826, %v1657
        %v1664 = vshrl.u32 2131351028, %v1658
        %v1665 = vor.u32 %v1663, %v1664
        %v1666 = vshll.u32 2131351028, %v1657
        %v1667 = vshrl.u32 2102212464, %v1658
        %v1668 = vor.u32 %v1666, %v1667
        %v1669 = vshll.u32 2102212464, %v1657
        %v1670 = vshrl.u32 920167782, %v1658
        %v1671 = vor.u32 %v1669, %v1670
        %v1672 = vshll.u32 920167782, %v1657
        %v1673 = vshrl.u32 1326507024, %v1658
        %v1674 = vor.u32 %v1672, %v1673
        %vm1675 = vcmp.lt.s32.totalorder %v1656, 1
        %vm1676 = vcmp.lt.s32.totalorder %v1656, 2
        %vm1677 = vcmp.lt.s32.totalorder %v1656, 3
        %vm1678 = vcmp.lt.s32.totalorder %v1656, 4
        %v1679 = vsel %vm1675, %v1659, %v1662
        %v1680 = vsel %vm1678, %v1668, 2102212464
        %v1681 = vsel %vm1677, %v1665, %v1680
        %v1682 = vsel %vm1676, %v1679, %v1681
        %v1683 = vsel %vm1675, %v1662, %v1665
        %v1684 = vsel %vm1678, %v1671, 920167782
        %v1685 = vsel %vm1677, %v1668, %v1684
        %v1686 = vsel %vm1676, %v1683, %v1685
        %v1687 = vsel %vm1675, %v1665, %v1668
        %v1688 = vsel %vm1678, %v1674, 1326507024
        %v1689 = vsel %vm1677, %v1671, %v1688
        %v1690 = vsel %vm1676, %v1687, %v1689
        %v1691 = vshll.u32 %v1651, 8
        %v1692 = vmul.u32.u64.compose %v1691, %v1690
        %v1693 = vextract.low.u32 %v1692
        %v1694 = vextract.high.u32 %v1692
        %v1695 = vmul.u32.u64.compose %v1691, %v1686
        %v1696 = vextract.low.u32 %v1695
        %v1697 = vextract.high.u32 %v1695
        %v1698 = vmul.u32 %v1691, %v1682
        %v1699 = vadd.s32 %v1694, %v1696
        %vm1700 = vc.u32 %v1694, %v1696
        %v1701 = vadd.s32 %v1697, 1
        %v1702 = vsel %vm1700, %v1701, %v1697
        %v1703 = vadd.s32 %v1698, %v1702
        %v1704 = vadd.s32 %v1703, 536870912
        %v1705 = vshrl.u32 %v1704, 30
        %v1706 = vshll.u32 %v1705, 30
        %v1707 = vsub.s32 %v1703, %v1706
        %vm1708 = vcmp.lt.s32.totalorder %v1707, 0
        %v1709 = vsub.s32 0, %v1707
        %v1710 = vsel %vm1708, %v1709, %v1707
        %v1711 = vclz %v1710
        %v1712 = vsub.s32 %v1711, 2
        %vm1713 = vcmp.gt.s32.totalorder 0, %v1712
        %v1714 = vsel %vm1713, 0, %v1712
        %v1715 = vsub.s32 32, %v1714
        %v1716 = vshll.u32 %v1707, %v1714
        %v1717 = vshrl.u32 %v1699, %v1715
        %v1718 = vor.u32 %v1716, %v1717
        %v1719 = vsub.s32 4294967266, %v1714
        %v1720 = vadd.s32 %v1719, 127
        %v1721 = vshll.u32 %v1720, 23
        %v1722 = vor.u32 4788187, %v1721
        %v1723 = vand.u32 2147483647, %v1722
        %v1725 = vcvt.s32.f32 %v1718
        %v1726 = vmul.f32 %v1725, %v1723
        %v1727 = vxor.u32 %v1726, 2147483648
        %v1728 = vsel %vm1645, %v1727, %v1726
        %v1729 = vsub.s32 4, %v1705
        %v1730 = vsel %vm1645, %v1729, %v1705
        %v1731 = vsel %vm1644, %v272, %v1728
        %v1732 = vsel %vm1644, 0, %v1730
        %v1733 = vcosq.f32.pop %v1731
        %v1734 = vsinq.f32.pop %v1731
        %vm1735 = vweird.f32 %v272
        %v1736 = vadd.s32 %v1732, 3
        %v1737 = vand.u32 %v1736, 3
        %vm1738 = vcmp.lt.s32.totalorder %v1737, 2
        %vm1739 = vcmp.eq.s32.totalorder %v1737, 0
        %v1740 = vxor.u32 %v1734, 2147483648
        %v1741 = vsel %vm1739, %v1733, %v1740
        %vm1742 = vcmp.eq.s32.totalorder %v1737, 2
        %v1743 = vxor.u32 %v1733, 2147483648
        %v1744 = vsel %vm1742, %v1743, %v1734
        %v1745 = vsel %vm1738, %v1741, %v1744
        %v1746 = vsel %vm1735, nan, %v1745
        %v1747 = vand.u32 2147483647, %v273
        %vm1748 = vcmp.le.f32.partialorder %v1747, 0.7853982
        %vm1749 = vcmp.lt.s32.totalorder %v273, 0
        %v1750 = vand.u32 %v273, 2139095040
        %v1751 = vshrl.u32 %v1750, 23
        %v1752 = vsub.s32 %v1751, 127
        %v1753 = vand.u32 2147483647, %v273
        %v1754 = vand.u32 %v1753, 8388607
        %v1755 = vor.u32 %v1754, 8388608
        %v1756 = vsub.s32 0, %v1755
        %v1757 = vadd.s32 %v1752, 1
        %vm1758 = vcmp.gt.s32.totalorder %v1757, 0
        %v1759 = vsel %vm1758, %v1757, 0
        %v1760 = vshrl.u32 %v1759, 5
        %v1761 = vand.u32 %v1759, 31
        %v1762 = vsub.s32 32, %v1761
        %v1763 = vshrl.u32 683565275, %v1762
        %v1764 = vshll.u32 683565275, %v1761
        %v1765 = vshrl.u32 2475754826, %v1762
        %v1766 = vor.u32 %v1764, %v1765
        %v1767 = vshll.u32 2475754826, %v1761
        %v1768 = vshrl.u32 2131351028, %v1762
        %v1769 = vor.u32 %v1767, %v1768
        %v1770 = vshll.u32 2131351028, %v1761
        %v1771 = vshrl.u32 2102212464, %v1762
        %v1772 = vor.u32 %v1770, %v1771
        %v1773 = vshll.u32 2102212464, %v1761
        %v1774 = vshrl.u32 920167782, %v1762
        %v1775 = vor.u32 %v1773, %v1774
        %v1776 = vshll.u32 920167782, %v1761
        %v1777 = vshrl.u32 1326507024, %v1762
        %v1778 = vor.u32 %v1776, %v1777
        %vm1779 = vcmp.lt.s32.totalorder %v1760, 1
        %vm1780 = vcmp.lt.s32.totalorder %v1760, 2
        %vm1781 = vcmp.lt.s32.totalorder %v1760, 3
        %vm1782 = vcmp.lt.s32.totalorder %v1760, 4
        %v1783 = vsel %vm1779, %v1763, %v1766
        %v1784 = vsel %vm1782, %v1772, 2102212464
        %v1785 = vsel %vm1781, %v1769, %v1784
        %v1786 = vsel %vm1780, %v1783, %v1785
        %v1787 = vsel %vm1779, %v1766, %v1769
        %v1788 = vsel %vm1782, %v1775, 920167782
        %v1789 = vsel %vm1781, %v1772, %v1788
        %v1790 = vsel %vm1780, %v1787, %v1789
        %v1791 = vsel %vm1779, %v1769, %v1772
        %v1792 = vsel %vm1782, %v1778, 1326507024
        %v1793 = vsel %vm1781, %v1775, %v1792
        %v1794 = vsel %vm1780, %v1791, %v1793
        %v1795 = vshll.u32 %v1755, 8
        %v1796 = vmul.u32.u64.compose %v1795, %v1794
        %v1797 = vextract.low.u32 %v1796
        %v1798 = vextract.high.u32 %v1796
        %v1799 = vmul.u32.u64.compose %v1795, %v1790
        %v1800 = vextract.low.u32 %v1799
        %v1801 = vextract.high.u32 %v1799
        %v1802 = vmul.u32 %v1795, %v1786
        %v1803 = vadd.s32 %v1798, %v1800
        %vm1804 = vc.u32 %v1798, %v1800
        %v1805 = vadd.s32 %v1801, 1
        %v1806 = vsel %vm1804, %v1805, %v1801
        %v1807 = vadd.s32 %v1802, %v1806
        %v1808 = vadd.s32 %v1807, 536870912
        %v1809 = vshrl.u32 %v1808, 30
        %v1810 = vshll.u32 %v1809, 30
        %v1811 = vsub.s32 %v1807, %v1810
        %vm1812 = vcmp.lt.s32.totalorder %v1811, 0
        %v1813 = vsub.s32 0, %v1811
        %v1814 = vsel %vm1812, %v1813, %v1811
        %v1815 = vclz %v1814
        %v1816 = vsub.s32 %v1815, 2
        %vm1817 = vcmp.gt.s32.totalorder 0, %v1816
        %v1818 = vsel %vm1817, 0, %v1816
        %v1819 = vsub.s32 32, %v1818
        %v1820 = vshll.u32 %v1811, %v1818
        %v1821 = vshrl.u32 %v1803, %v1819
        %v1822 = vor.u32 %v1820, %v1821
        %v1823 = vsub.s32 4294967266, %v1818
        %v1824 = vadd.s32 %v1823, 127
        %v1825 = vshll.u32 %v1824, 23
        %v1826 = vor.u32 4788187, %v1825
        %v1827 = vand.u32 2147483647, %v1826
        %v1829 = vcvt.s32.f32 %v1822
        %v1830 = vmul.f32 %v1829, %v1827
        %v1831 = vxor.u32 %v1830, 2147483648
        %v1832 = vsel %vm1749, %v1831, %v1830
        %v1833 = vsub.s32 4, %v1809
        %v1834 = vsel %vm1749, %v1833, %v1809
        %v1835 = vsel %vm1748, %v273, %v1832
        %v1836 = vsel %vm1748, 0, %v1834
        %v1837 = vcosq.f32.pop %v1835
        %v1838 = vsinq.f32.pop %v1835
        %vm1839 = vweird.f32 %v273
        %v1840 = vadd.s32 %v1836, 3
        %v1841 = vand.u32 %v1840, 3
        %vm1842 = vcmp.lt.s32.totalorder %v1841, 2
        %vm1843 = vcmp.eq.s32.totalorder %v1841, 0
        %v1844 = vxor.u32 %v1838, 2147483648
        %v1845 = vsel %vm1843, %v1837, %v1844
        %vm1846 = vcmp.eq.s32.totalorder %v1841, 2
        %v1847 = vxor.u32 %v1837, 2147483648
        %v1848 = vsel %vm1846, %v1847, %v1838
        %v1849 = vsel %vm1842, %v1845, %v1848
        %v1850 = vsel %vm1839, nan, %v1849
        %v1851 = vand.u32 2147483647, %v274
        %vm1852 = vcmp.le.f32.partialorder %v1851, 0.7853982
        %vm1853 = vcmp.lt.s32.totalorder %v274, 0
        %v1854 = vand.u32 %v274, 2139095040
        %v1855 = vshrl.u32 %v1854, 23
        %v1856 = vsub.s32 %v1855, 127
        %v1857 = vand.u32 2147483647, %v274
        %v1858 = vand.u32 %v1857, 8388607
        %v1859 = vor.u32 %v1858, 8388608
        %v1860 = vsub.s32 0, %v1859
        %v1861 = vadd.s32 %v1856, 1
        %vm1862 = vcmp.gt.s32.totalorder %v1861, 0
        %v1863 = vsel %vm1862, %v1861, 0
        %v1864 = vshrl.u32 %v1863, 5
        %v1865 = vand.u32 %v1863, 31
        %v1866 = vsub.s32 32, %v1865
        %v1867 = vshrl.u32 683565275, %v1866
        %v1868 = vshll.u32 683565275, %v1865
        %v1869 = vshrl.u32 2475754826, %v1866
        %v1870 = vor.u32 %v1868, %v1869
        %v1871 = vshll.u32 2475754826, %v1865
        %v1872 = vshrl.u32 2131351028, %v1866
        %v1873 = vor.u32 %v1871, %v1872
        %v1874 = vshll.u32 2131351028, %v1865
        %v1875 = vshrl.u32 2102212464, %v1866
        %v1876 = vor.u32 %v1874, %v1875
        %v1877 = vshll.u32 2102212464, %v1865
        %v1878 = vshrl.u32 920167782, %v1866
        %v1879 = vor.u32 %v1877, %v1878
        %v1880 = vshll.u32 920167782, %v1865
        %v1881 = vshrl.u32 1326507024, %v1866
        %v1882 = vor.u32 %v1880, %v1881
        %vm1883 = vcmp.lt.s32.totalorder %v1864, 1
        %vm1884 = vcmp.lt.s32.totalorder %v1864, 2
        %vm1885 = vcmp.lt.s32.totalorder %v1864, 3
        %vm1886 = vcmp.lt.s32.totalorder %v1864, 4
        %v1887 = vsel %vm1883, %v1867, %v1870
        %v1888 = vsel %vm1886, %v1876, 2102212464
        %v1889 = vsel %vm1885, %v1873, %v1888
        %v1890 = vsel %vm1884, %v1887, %v1889
        %v1891 = vsel %vm1883, %v1870, %v1873
        %v1892 = vsel %vm1886, %v1879, 920167782
        %v1893 = vsel %vm1885, %v1876, %v1892
        %v1894 = vsel %vm1884, %v1891, %v1893
        %v1895 = vsel %vm1883, %v1873, %v1876
        %v1896 = vsel %vm1886, %v1882, 1326507024
        %v1897 = vsel %vm1885, %v1879, %v1896
        %v1898 = vsel %vm1884, %v1895, %v1897
        %v1899 = vshll.u32 %v1859, 8
        %v1900 = vmul.u32.u64.compose %v1899, %v1898
        %v1901 = vextract.low.u32 %v1900
        %v1902 = vextract.high.u32 %v1900
        %v1903 = vmul.u32.u64.compose %v1899, %v1894
        %v1904 = vextract.low.u32 %v1903
        %v1905 = vextract.high.u32 %v1903
        %v1906 = vmul.u32 %v1899, %v1890
        %v1907 = vadd.s32 %v1902, %v1904
        %vm1908 = vc.u32 %v1902, %v1904
        %v1909 = vadd.s32 %v1905, 1
        %v1910 = vsel %vm1908, %v1909, %v1905
        %v1911 = vadd.s32 %v1906, %v1910
        %v1912 = vadd.s32 %v1911, 536870912
        %v1913 = vshrl.u32 %v1912, 30
        %v1914 = vshll.u32 %v1913, 30
        %v1915 = vsub.s32 %v1911, %v1914
        %vm1916 = vcmp.lt.s32.totalorder %v1915, 0
        %v1917 = vsub.s32 0, %v1915
        %v1918 = vsel %vm1916, %v1917, %v1915
        %v1919 = vclz %v1918
        %v1920 = vsub.s32 %v1919, 2
        %vm1921 = vcmp.gt.s32.totalorder 0, %v1920
        %v1922 = vsel %vm1921, 0, %v1920
        %v1923 = vsub.s32 32, %v1922
        %v1924 = vshll.u32 %v1915, %v1922
        %v1925 = vshrl.u32 %v1907, %v1923
        %v1926 = vor.u32 %v1924, %v1925
        %v1927 = vsub.s32 4294967266, %v1922
        %v1928 = vadd.s32 %v1927, 127
        %v1929 = vshll.u32 %v1928, 23
        %v1930 = vor.u32 4788187, %v1929
        %v1931 = vand.u32 2147483647, %v1930
        %v1933 = vcvt.s32.f32 %v1926
        %v1934 = vmul.f32 %v1933, %v1931
        %v1935 = vxor.u32 %v1934, 2147483648
        %v1936 = vsel %vm1853, %v1935, %v1934
        %v1937 = vsub.s32 4, %v1913
        %v1938 = vsel %vm1853, %v1937, %v1913
        %v1939 = vsel %vm1852, %v274, %v1936
        %v1940 = vsel %vm1852, 0, %v1938
        %v1941 = vcosq.f32.pop %v1939
        %v1942 = vsinq.f32.pop %v1939
        %vm1943 = vweird.f32 %v274
        %v1944 = vadd.s32 %v1940, 3
        %v1945 = vand.u32 %v1944, 3
        %vm1946 = vcmp.lt.s32.totalorder %v1945, 2
        %vm1947 = vcmp.eq.s32.totalorder %v1945, 0
        %v1948 = vxor.u32 %v1942, 2147483648
        %v1949 = vsel %vm1947, %v1941, %v1948
        %vm1950 = vcmp.eq.s32.totalorder %v1945, 2
        %v1951 = vxor.u32 %v1941, 2147483648
        %v1952 = vsel %vm1950, %v1951, %v1942
        %v1953 = vsel %vm1946, %v1949, %v1952
        %v1954 = vsel %vm1943, nan, %v1953
        %v1955 = vadd.f32 %v275, %v394
        %v1956 = vadd.f32 %v276, %v498
        %v1957 = vadd.f32 %v277, %v602
        %v1958 = vadd.f32 %v278, %v706
        %v1959 = vadd.f32 %v279, %v810
        %v1960 = vadd.f32 %v280, %v914
        %v1961 = vadd.f32 %v281, %v1018
        %v1962 = vadd.f32 %v282, %v1122
        %v1963 = vadd.f32 %v283, %v1226
        %v1964 = vadd.f32 %v284, %v1330
        %v1965 = vadd.f32 %v285, %v1434
        %v1966 = vadd.f32 %v286, %v1538
        %v1967 = vadd.f32 %v287, %v1642
        %v1968 = vadd.f32 %v288, %v1746
        %v1969 = vadd.f32 %v289, %v1850
        %v1970 = vadd.f32 %v290, %v1954
        %1971 = vst [vmem:[%s189] sm:$0xff] %v1955
        %1972 = vst [vmem:[%s189 + $0x8] sm:$0xff] %v1956
        %1973 = vst [vmem:[%s189 + $0x10] sm:$0xff] %v1957
        %1974 = vst [vmem:[%s189 + $0x18] sm:$0xff] %v1958
        %1975 = vst [vmem:[%s189 + $0x20] sm:$0xff] %v1959
        %1976 = vst [vmem:[%s189 + $0x28] sm:$0xff] %v1960
        %1977 = vst [vmem:[%s189 + $0x30] sm:$0xff] %v1961
        %1978 = vst [vmem:[%s189 + $0x38] sm:$0xff] %v1962
        %1979 = vst [vmem:[%s189 + $0x40] sm:$0xff] %v1963
        %1980 = vst [vmem:[%s189 + $0x48] sm:$0xff] %v1964
        %1981 = vst [vmem:[%s189 + $0x50] sm:$0xff] %v1965
        %1982 = vst [vmem:[%s189 + $0x58] sm:$0xff] %v1966
        %1983 = vst [vmem:[%s189 + $0x60] sm:$0xff] %v1967
        %1984 = vst [vmem:[%s189 + $0x68] sm:$0xff] %v1968
        %1985 = vst [vmem:[%s189 + $0x70] sm:$0xff] %v1969
        %1986 = vst [vmem:[%s189 + $0x78] sm:$0xff] %v1970
        %s1987 = sand.u32 %s96, 1
        %s1988 = scalar_lea.sflag [#allocation4], %s1987
        %s1989 = sand.u32 %s96, 1
        %s1990 = smul.addr %s1989, 128
        %s1991 = scalar_lea.vmem [#allocation5], %s1990
        // Predicated region
        $region37: #{tpu_custom_call.1} parent=31 // pred_check
          %p1992 = pneg %p106
        $region38: #{tpu_custom_call.1} parent=31 // pred_check_branch
          %1994 = sbr.rel (%p1992) target = $region40
        $region39: #{tpu_custom_call.1} parent=31 // pred_region
          %s1995 = smul.u32 8, %s20
          %s1997 = ssub.s32 2048, 2048
          %1998 = vsyncadd %s1988, %s1997
          %s1999 = smul.addr %s1995, 2
          %s2000 = smul.addr %s1999, 128
          %s2001 = scalar_lea.hbm %s3, %s2000
          %s2002 = sshll.u32 %s1991, 4
          %s2003 = int_to_ptr.vmem [resolvable:$true] %s2002
          %2008 = dma.vmem_to_hbm [thread:$0]  %s2003, 2048, %s2001, %s1988, 256, 256, 16
        $region40: #{tpu_custom_call.1} parent=31 // pred_fallthru
          _
      $region32: #{tpu_custom_call.1} parent=5 // pred_fallthru
        _
      %p2009 = scmp.le.s32.totalorder 2, %s15
      // Predicated region
      $region41: #{tpu_custom_call.1} parent=5 // pred_check
        %p2010 = pneg %p2009
      $region42: #{tpu_custom_call.1} parent=5 // pred_check_branch
        %2012 = sbr.rel (%p2010) target = $region44
      $region43: #{tpu_custom_call.1} parent=5 // pred_region
        %s2013 = ssub.s32 %s15, 2
        // Predicated region
        $region45: #{tpu_custom_call.1} parent=43 // pred_check
          %p2014 = pneg %p112
        $region46: #{tpu_custom_call.1} parent=43 // pred_check_branch
          %2016 = sbr.rel (%p2014) target = $region48
        $region47: #{tpu_custom_call.1} parent=43 // pred_region
          %s2017 = sand.u32 %s97, 1
          %s2018 = scalar_lea.sflag [#allocation4], %s2017
          %s2019 = sand.u32 %s97, 1
          %s2020 = smul.addr %s2019, 128
          %s2021 = scalar_lea.vmem [#allocation5], %s2020
          %2022 = dma.done %s2018, 2048
        $region48: #{tpu_custom_call.1} parent=43 // pred_fallthru
          _
      $region44: #{tpu_custom_call.1} parent=5 // pred_fallthru
        _
    $region6: #{tpu_custom_call.1} parent=1 // loop_footer
      %s19 = sadd.s32 1, %s15
    $region7: #{tpu_custom_call.1} parent=1 // loop_footer_branch
      %14 = sbr.rel target = $region3
    $region8: #{tpu_custom_call.1} parent=1 // loop_exit
      _
    %2023 = vsyncpa [#allocation3], 1
    %s2024 = scalar_lea.sflag [#allocation3], 1
    %2025 = vsyncpa %s2024, 1
    %2026 = vsyncpa [#allocation4], 1
    %s2027 = scalar_lea.sflag [#allocation4], 1
    %2028 = vsyncpa %s2027, 1

</llo_original>
